<compile_context>
chip_gen: v6e
topology: v6e:2x2x1
jax: 0.10.0
libtpu: 0.0.40
codegen_flags: <defaults>
</compile_context>

<pallas_src>
import functools
import math

import jax
import jax.numpy as jnp
from jax.experimental import pallas as pl
from jax.experimental.pallas import tpu as pltpu


# ----------------------------- in-kernel helpers -----------------------------

def _layernorm(x, w, b, eps=1e-5):
    mu = jnp.mean(x, axis=-1, keepdims=True)
    var = jnp.mean((x - mu) ** 2, axis=-1, keepdims=True)
    return (x - mu) * jax.lax.rsqrt(var + eps) * w + b


def _gelu_tanh(x):
    c = math.sqrt(2.0 / math.pi)
    return 0.5 * x * (1.0 + jnp.tanh(c * (x + 0.044715 * x * x * x)))


_NEG = -1e30  # finite "-inf": avoids 0/0 if fully-masked rows ever appear


def _causal_attention_head(q, k, v, kv_chunk):
    """Causal attention for one head with kv-chunked online softmax.

    q, k, v: (T, hd) bf16.  q is pre-scaled by 1/sqrt(hd) (folded into the
    repacked qkv weights).  Only (T, kv_chunk) scores are live at a time.
    """
    T, hd = q.shape
    m = jnp.full((T, 1), _NEG, jnp.float32)
    l = jnp.zeros((T, 1), jnp.float32)
    acc = jnp.zeros((T, hd), jnp.float32)
    row = jax.lax.broadcasted_iota(jnp.int32, (T, 1), 0)
    dn = (((1,), (1,)), ((), ()))               # contract last dims: q @ k^T
    for c0 in range(0, T, kv_chunk):
        kc = min(kv_chunk, T - c0)
        kb = k[c0:c0 + kc, :]
        vb = v[c0:c0 + kc, :]
        s = jax.lax.dot_general(q, kb, dn, preferred_element_type=jnp.float32)
        col = jax.lax.broadcasted_iota(jnp.int32, (1, kc), 1) + c0
        s = jnp.where(row >= col, s, _NEG)                    # causal mask
        m_new = jnp.maximum(m, jnp.max(s, axis=-1, keepdims=True))
        alpha = jnp.exp(m - m_new)
        p = jnp.exp(s - m_new)
        l = alpha * l + jnp.sum(p, axis=-1, keepdims=True)
        acc = alpha * acc + jnp.dot(p.astype(jnp.bfloat16), vb,
                                    preferred_element_type=jnp.float32)
        m = m_new
    # softmax denominator folded in via the EUP approx reciprocal (free slot)
    return acc * pl.reciprocal(l, approx=True)


# ------------------------------ attention kernel ------------------------------

def attn_kernel(x_ref, ln1_w_ref, ln1_b_ref,
                w_qkv_ref, b_qkv_ref, w_proj_ref, b_proj_ref,
                out_ref, h1_ref,
                *, group_size, head_dim, kv_chunk):
    hg = pl.program_id(1)
    Ghd = group_size * head_dim

    @pl.when(hg == 0)
    def _init():
        x = x_ref[0]
        h1_ref[...] = _layernorm(x, ln1_w_ref[...],
                                 ln1_b_ref[...]).astype(jnp.bfloat16)
        out_ref[0] = x + b_proj_ref[...]          # residual + c_proj bias

    h1 = h1_ref[...]                               # cached LN1(x), bf16 (T, C)

    # fused QKV projection for the whole head group: (T, C) @ (C, 3*G*hd)
    qkv = (jnp.dot(h1, w_qkv_ref[0], preferred_element_type=jnp.float32)
           + b_qkv_ref[0]).astype(jnp.bfloat16)
    q_all = qkv[:, 0 * Ghd:1 * Ghd]
    k_all = qkv[:, 1 * Ghd:2 * Ghd]
    v_all = qkv[:, 2 * Ghd:3 * Ghd]

    ys = []
    for g in range(group_size):
        sl = slice(g * head_dim, (g + 1) * head_dim)
        yh = _causal_attention_head(q_all[:, sl], k_all[:, sl], v_all[:, sl],
                                    kv_chunk)
        ys.append(yh.astype(jnp.bfloat16))
    y_group = jnp.concatenate(ys, axis=-1)         # (T, G*hd) bf16

    # output projection, contraction depth K = G*hd, accumulated into the
    # VMEM-resident output block (same block index across the hg axis).
    out_ref[0] = out_ref[0] + jnp.dot(y_group, w_proj_ref[0],
                                      preferred_element_type=jnp.float32)


# --------------------------------- MLP kernel ---------------------------------

def mlp_kernel(x_ref, ln2_w_ref, ln2_b_ref,
               w_fc_ref, b_fc_ref, w_fp_ref, b_fp_ref,
               out_ref, h2_ref):
    hc = pl.program_id(2)

    @pl.when(hc == 0)
    def _init():
        x1 = x_ref[0]
        h2_ref[...] = _layernorm(x1, ln2_w_ref[...],
                                 ln2_b_ref[...]).astype(jnp.bfloat16)
        out_ref[0] = x1 + b_fp_ref[...]           # residual + c_proj bias

    f = (jnp.dot(h2_ref[...], w_fc_ref[...],
                 preferred_element_type=jnp.float32) + b_fc_ref[...])
    f = _gelu_tanh(f)
    out_ref[0] = out_ref[0] + jnp.dot(f.astype(jnp.bfloat16), w_fp_ref[...],
                                      preferred_element_type=jnp.float32)


# --------------------------------- wrappers -----------------------------------

def _vmem_limit_bytes():
    cap = 128 * 1024 * 1024
    try:
        info = pltpu.get_tpu_info()
        cap = int(getattr(info, "vmem_capacity_bytes", cap))
    except Exception:
        pass
    return int(max(32 * 1024 * 1024, min(int(cap * 0.6), 96 * 1024 * 1024)))


def _pick_group(n_head, head_dim, target=256):
    g = 1
    for cand in range(1, n_head + 1):
        if n_head % cand == 0 and cand * head_dim <= target:
            g = cand
    return g


def _pick_tile(total, target, align):
    if total <= target:
        return total
    start = target - (target % align)
    for cand in range(start, 0, -align):
        if total % cand == 0:
            return cand
    return total


def _attention_part(x, params, n_head, group_size=None):
    B, T, C = x.shape
    assert C % n_head == 0
    hd = C // n_head
    bf16, f32 = jnp.bfloat16, jnp.float32

    G = group_size if group_size is not None else _pick_group(n_head, hd)
    assert n_head % G == 0
    HG = n_head // G
    Ghd = G * hd
    kv_chunk = min(T, 512)
    scale = 1.0 / math.sqrt(hd)

    # repack: fold softmax scale into q; pack per head-group, qkv-major.
    w3 = params["w_attn"].reshape(C, 3, n_head, hd).astype(f32)
    b3 = params["b_attn"].reshape(3, n_head, hd).astype(f32)
    w3 = w3.at[:, 0].multiply(scale)
    b3 = b3.at[0].multiply(scale)
    w_qkv = (w3.reshape(C, 3, HG, G, hd)
               .transpose(2, 0, 1, 3, 4)                 # (HG, C, 3, G, hd)
               .reshape(HG, C, 3 * Ghd).astype(bf16))
    b_qkv = (b3.reshape(3, HG, G, hd)
               .transpose(1, 0, 2, 3)                    # (HG, 3, G, hd)
               .reshape(HG, 1, 3 * Ghd).astype(f32))
    w_proj = params["w_proj"].reshape(HG, Ghd, C).astype(bf16)

    ln1_w = params["ln1_w"].reshape(1, C).astype(f32)
    ln1_b = params["ln1_b"].reshape(1, C).astype(f32)
    b_proj = params["b_proj"].reshape(1, C).astype(f32)

    def const_spec(arr):
        z = (0,) * arr.ndim
        return pl.BlockSpec(arr.shape, lambda b, h, _z=z: _z)

    in_specs = [
        pl.BlockSpec((1, T, C), lambda b, h: (b, 0, 0)),          # x
        const_spec(ln1_w), const_spec(ln1_b),
        pl.BlockSpec((1, C, 3 * Ghd), lambda b, h: (h, 0, 0)),    # w_qkv / group
        pl.BlockSpec((1, 1, 3 * Ghd), lambda b, h: (h, 0, 0)),    # b_qkv / group
        pl.BlockSpec((1, Ghd, C), lambda b, h: (h, 0, 0)),        # w_proj / group
        const_spec(b_proj),
    ]

    flops = 2 * B * T * C * 3 * C + 4 * B * T * T * C + 2 * B * T * C * C
    transcendentals = B * n_head * T * T
    bytes_accessed = int(2 * B * T * C * 4
                         + (w_qkv.size + w_proj.size) * 2
                         + (b_qkv.size + b_proj.size
                            + ln1_w.size + ln1_b.size) * 4)

    kernel = functools.partial(attn_kernel, group_size=G, head_dim=hd,
                               kv_chunk=kv_chunk)

    return pl.pallas_call(
        kernel,
        out_shape=jax.ShapeDtypeStruct((B, T, C), jnp.float32),
        grid_spec=pltpu.PrefetchScalarGridSpec(
            num_scalar_prefetch=0,
            grid=(B, HG),
            in_specs=in_specs,
            out_specs=pl.BlockSpec((1, T, C), lambda b, h: (b, 0, 0)),
            scratch_shapes=[pltpu.VMEM((T, C), jnp.bfloat16)],   # cached LN1(x)
        ),
        compiler_params=pltpu.CompilerParams(
            dimension_semantics=("parallel", "arbitrary"),
            vmem_limit_bytes=_vmem_limit_bytes()),
        cost_estimate=pl.CostEstimate(flops=flops,
                                      transcendentals=transcendentals,
                                      bytes_accessed=bytes_accessed),
    )(x, ln1_w, ln1_b, w_qkv, b_qkv, w_proj, b_proj)


def _mlp_part(x1, params):
    B, T, C = x1.shape
    C4 = params["w_fc"].shape[1]
    bf16, f32 = jnp.bfloat16, jnp.float32

    TM = _pick_tile(T, 256, 8)          # row tile
    HC = _pick_tile(C4, 512, 128)       # streamed hidden chunk

    ln2_w = params["ln2_w"].reshape(1, C).astype(f32)
    ln2_b = params["ln2_b"].reshape(1, C).astype(f32)
    w_fc = params["w_fc"].astype(bf16)
    b_fc = params["b_fc"].reshape(1, C4).astype(f32)
    w_fp = params["w_fc_proj"].astype(bf16)
    b_fp = params["b_fc_proj"].reshape(1, C).astype(f32)

    def const_spec(arr):
        z = (0,) * arr.ndim
        return pl.BlockSpec(arr.shape, lambda b, r, c, _z=z: _z)

    in_specs = [
        pl.BlockSpec((1, TM, C), lambda b, r, c: (b, r, 0)),      # x1 row tile
        const_spec(ln2_w), const_spec(ln2_b),
        pl.BlockSpec((C, HC), lambda b, r, c: (0, c)),            # stream w_fc
        pl.BlockSpec((1, HC), lambda b, r, c: (0, c)),            # stream b_fc
        pl.BlockSpec((HC, C), lambda b, r, c: (c, 0)),            # stream w_fc_proj
        const_spec(b_fp),
    ]

    flops = 4 * B * T * C * C4
    transcendentals = B * T * C4
    bytes_accessed = int(2 * B * T * C * 4 + (w_fc.size + w_fp.size) * 2
                         + (b_fc.size + b_fp.size
                            + ln2_w.size + ln2_b.size) * 4)

    return pl.pallas_call(
        mlp_kernel,
        out_shape=jax.ShapeDtypeStruct((B, T, C), jnp.float32),
        grid_spec=pltpu.PrefetchScalarGridSpec(
            num_scalar_prefetch=0,
            grid=(B, T // TM, C4 // HC),
            in_specs=in_specs,
            out_specs=pl.BlockSpec((1, TM, C), lambda b, r, c: (b, r, 0)),
            scratch_shapes=[pltpu.VMEM((TM, C), jnp.bfloat16)],  # cached LN2(x1)
        ),
        compiler_params=pltpu.CompilerParams(
            dimension_semantics=("parallel", "parallel", "arbitrary"),
            vmem_limit_bytes=_vmem_limit_bytes()),
        cost_estimate=pl.CostEstimate(flops=flops,
                                      transcendentals=transcendentals,
                                      bytes_accessed=bytes_accessed),
    )(x1, ln2_w, ln2_b, w_fc, b_fc, w_fp, b_fp)


def gpt_block(x, params, n_head, *, group_size=None):
    x1 = _attention_part(x, params, n_head, group_size)
    return _mlp_part(x1, params)


# --------------------------- pure-JAX reference -------------------------------

def ref_block(x, p, n_head):
    def ln(z, w, b):
        mu = z.mean(-1, keepdims=True)
        var = ((z - mu) ** 2).mean(-1, keepdims=True)
        return (z - mu) * jax.lax.rsqrt(var + 1e-5) * w + b

    B, T, C = x.shape
    hd = C // n_head

    h = ln(x, p["ln1_w"], p["ln1_b"])
    qkv = h @ p["w_attn"] + p["b_attn"]
    q, k, v = jnp.split(qkv, 3, axis=-1)
    q = q.reshape(B, T, n_head, hd).transpose(0, 2, 1, 3)
    k = k.reshape(B, T, n_head, hd).transpose(0, 2, 1, 3)
    v = v.reshape(B, T, n_head, hd).transpose(0, 2, 1, 3)
    att = (q @ jnp.swapaxes(k, -2, -1)) * (1.0 / math.sqrt(hd))
    mask = jnp.tril(jnp.ones((T, T), dtype=bool))
    att = jnp.where(mask, att, -jnp.inf)
    att = jax.nn.softmax(att, axis=-1)
    y = (att @ v).transpose(0, 2, 1, 3).reshape(B, T, C)
    y = y @ p["w_proj"] + p["b_proj"]
    x = x + y

    h2 = ln(x, p["ln2_w"], p["ln2_b"])
    f = h2 @ p["w_fc"] + p["b_fc"]
    cc = math.sqrt(2.0 / math.pi)
    f = 0.5 * f * (1.0 + jnp.tanh(cc * (f + 0.044715 * f ** 3)))
    f = f @ p["w_fc_proj"] + p["b_fc_proj"]
    return x + f


# ----------------------------------- main -------------------------------------

if __name__ == "__main__":
    B, T, C, n_head = 2, 8, 32, 4   # block_size == T

    key = jax.random.PRNGKey(0)
    ks = jax.random.split(key, 9)

    params = {
        "ln1_w": jnp.ones((1, C), jnp.float32),
        "ln1_b": jnp.zeros((1, C), jnp.float32),
        # nn.Linear(n_embd, 3*n_embd) stored as (in, out) so y = x @ W + b
        "w_attn": 0.02 * jax.random.normal(ks[0], (C, 3 * C), jnp.float32),
        "b_attn": 0.02 * jax.random.normal(ks[1], (1, 3 * C), jnp.float32),
        "w_proj": 0.02 * jax.random.normal(ks[2], (C, C), jnp.float32),
        "b_proj": 0.02 * jax.random.normal(ks[3], (1, C), jnp.float32),
        "ln2_w": jnp.ones((1, C), jnp.float32),
        "ln2_b": jnp.zeros((1, C), jnp.float32),
        "w_fc": 0.02 * jax.random.normal(ks[4], (C, 4 * C), jnp.float32),
        "b_fc": 0.02 * jax.random.normal(ks[5], (1, 4 * C), jnp.float32),
        "w_fc_proj": 0.02 * jax.random.normal(ks[6], (4 * C, C), jnp.float32),
        "b_fc_proj": 0.02 * jax.random.normal(ks[7], (1, C), jnp.float32),
    }

    x = jax.random.normal(ks[8], (B, T, C), jnp.float32)

    out = jax.block_until_ready(gpt_block(x, params, n_head))
    ref = ref_block(x, params, n_head)

    assert out.shape == (B, T, C)
    err = float(jnp.max(jnp.abs(out - ref)))
    # bf16 matmul operands + approx reciprocal -> looser tolerance than f32.
    assert err < 2e-2, f"max err {err}"

    print("KERNEL_OK")
</pallas_src>

<mosaic_0001>
module attributes {stable_mosaic.version = 11 : i64} {
  func.func @attn_kernel(%arg0: i32, %arg1: i32, %arg2: memref<1x8x32xf32, #tpu.memory_space<vmem>>, %arg3: memref<1x32xf32, #tpu.memory_space<vmem>>, %arg4: memref<1x32xf32, #tpu.memory_space<vmem>>, %arg5: memref<1x32x96xbf16, #tpu.memory_space<vmem>>, %arg6: memref<1x1x96xf32, #tpu.memory_space<vmem>>, %arg7: memref<1x32x32xbf16, #tpu.memory_space<vmem>>, %arg8: memref<1x32xf32, #tpu.memory_space<vmem>>, %arg9: memref<1x8x32xf32, #tpu.memory_space<vmem>>, %arg10: memref<8x32xbf16, #tpu.memory_space<vmem>>) attributes {dimension_semantics = [#tpu.dimension_semantics<parallel>, #tpu.dimension_semantics<arbitrary>], iteration_bounds = array<i64: 2, 1>, scalar_prefetch = 0 : i64, scratch_operands = 1 : i64, tpu.core_type = #tpu.core_type<tc>, window_params = [{transform_indices = @transform_0, window_bounds = array<i64: 1, 8, 32>}, {pipeline_mode = #tpu.pipeline_mode<synchronous>, transform_indices = @transform_1, window_bounds = array<i64: 1, 32>}, {pipeline_mode = #tpu.pipeline_mode<synchronous>, transform_indices = @transform_2, window_bounds = array<i64: 1, 32>}, {transform_indices = @transform_3, window_bounds = array<i64: 1, 32, 96>}, {transform_indices = @transform_4, window_bounds = array<i64: 1, 1, 96>}, {transform_indices = @transform_5, window_bounds = array<i64: 1, 32, 32>}, {pipeline_mode = #tpu.pipeline_mode<synchronous>, transform_indices = @transform_6, window_bounds = array<i64: 1, 32>}, {transform_indices = @transform_7, window_bounds = array<i64: 1, 8, 32>}]} {
    %c0_i32 = arith.constant 0 : i32
    %0 = arith.cmpi eq, %arg1, %c0_i32 : i32
    %1 = arith.extui %0 : i1 to i32
    %c0_i32_0 = arith.constant 0 : i32
    %2 = arith.cmpi ne, %1, %c0_i32_0 : i32
    scf.if %2 {
      %c0_54 = arith.constant 0 : index
      %c0_55 = arith.constant 0 : index
      %c0_56 = arith.constant 0 : index
      %173 = vector.load %arg2[%c0_54, %c0_55, %c0_56] : memref<1x8x32xf32, #tpu.memory_space<vmem>>, vector<1x8x32xf32>
      %174 = vector.shape_cast %173 : vector<1x8x32xf32> to vector<8x32xf32>
      %c0_57 = arith.constant 0 : index
      %c0_58 = arith.constant 0 : index
      %175 = vector.load %arg3[%c0_57, %c0_58] : memref<1x32xf32, #tpu.memory_space<vmem>>, vector<1x32xf32>
      %c0_59 = arith.constant 0 : index
      %c0_60 = arith.constant 0 : index
      %176 = vector.load %arg4[%c0_59, %c0_60] : memref<1x32xf32, #tpu.memory_space<vmem>>, vector<1x32xf32>
      %cst_61 = arith.constant dense<0.000000e+00> : vector<8xf32>
      %177 = vector.multi_reduction <add>, %174, %cst_61 [1] : vector<8x32xf32> to vector<8xf32>
      %178 = vector.shape_cast %177 : vector<8xf32> to vector<8x1xf32>
      %cst_62 = arith.constant 3.200000e+01 : f32
      %179 = vector.broadcast %cst_62 : f32 to vector<8x1xf32>
      %180 = arith.divf %178, %179 : vector<8x1xf32>
      %181 = vector.broadcast %180 : vector<8x1xf32> to vector<8x32xf32>
      %182 = arith.subf %174, %181 : vector<8x32xf32>
      %183 = arith.mulf %182, %182 : vector<8x32xf32>
      %cst_63 = arith.constant dense<0.000000e+00> : vector<8xf32>
      %184 = vector.multi_reduction <add>, %183, %cst_63 [1] : vector<8x32xf32> to vector<8xf32>
      %185 = vector.shape_cast %184 : vector<8xf32> to vector<8x1xf32>
      %cst_64 = arith.constant 3.200000e+01 : f32
      %186 = vector.broadcast %cst_64 : f32 to vector<8x1xf32>
      %187 = arith.divf %185, %186 : vector<8x1xf32>
      %188 = vector.broadcast %180 : vector<8x1xf32> to vector<8x32xf32>
      %189 = arith.subf %174, %188 : vector<8x32xf32>
      %cst_65 = arith.constant 9.99999974E-6 : f32
      %190 = vector.broadcast %cst_65 : f32 to vector<8x1xf32>
      %191 = arith.addf %187, %190 : vector<8x1xf32>
      %192 = math.rsqrt %191 : vector<8x1xf32>
      %193 = vector.broadcast %192 : vector<8x1xf32> to vector<8x32xf32>
      %194 = arith.mulf %189, %193 : vector<8x32xf32>
      %195 = vector.broadcast %175 : vector<1x32xf32> to vector<8x32xf32>
      %196 = arith.mulf %194, %195 : vector<8x32xf32>
      %197 = vector.broadcast %176 : vector<1x32xf32> to vector<8x32xf32>
      %198 = arith.addf %196, %197 : vector<8x32xf32>
      %199 = arith.truncf %198 : vector<8x32xf32> to vector<8x32xbf16>
      %c0_66 = arith.constant 0 : index
      %c0_67 = arith.constant 0 : index
      %200 = vector.load %arg10[%c0_66, %c0_67] : memref<8x32xbf16, #tpu.memory_space<vmem>>, vector<8x32xbf16>
      tpu.vector_store %arg10[%c0_66, %c0_67], %199 {strides = array<i32>} : memref<8x32xbf16, #tpu.memory_space<vmem>>, vector<8x32xbf16>,
      %c0_68 = arith.constant 0 : index
      %c0_69 = arith.constant 0 : index
      %201 = vector.load %arg8[%c0_68, %c0_69] : memref<1x32xf32, #tpu.memory_space<vmem>>, vector<1x32xf32>
      %202 = vector.broadcast %201 : vector<1x32xf32> to vector<8x32xf32>
      %203 = arith.addf %174, %202 : vector<8x32xf32>
      %c0_70 = arith.constant 0 : index
      %c0_71 = arith.constant 0 : index
      %c0_72 = arith.constant 0 : index
      %204 = vector.load %arg9[%c0_70, %c0_71, %c0_72] : memref<1x8x32xf32, #tpu.memory_space<vmem>>, vector<1x8x32xf32>
      %205 = vector.shape_cast %204 : vector<1x8x32xf32> to vector<8x32xf32>
      %206 = vector.shape_cast %203 : vector<8x32xf32> to vector<1x8x32xf32>
      tpu.vector_store %arg9[%c0_70, %c0_71, %c0_72], %206 {strides = array<i32>} : memref<1x8x32xf32, #tpu.memory_space<vmem>>, vector<1x8x32xf32>,
    } else {
    }
    %c0 = arith.constant 0 : index
    %c0_1 = arith.constant 0 : index
    %3 = vector.load %arg10[%c0, %c0_1] : memref<8x32xbf16, #tpu.memory_space<vmem>>, vector<8x32xbf16>
    %c0_2 = arith.constant 0 : index
    %c0_3 = arith.constant 0 : index
    %c0_4 = arith.constant 0 : index
    %4 = vector.load %arg5[%c0_2, %c0_3, %c0_4] : memref<1x32x96xbf16, #tpu.memory_space<vmem>>, vector<1x32x96xbf16>
    %5 = vector.shape_cast %4 : vector<1x32x96xbf16> to vector<32x96xbf16>
    %cst = arith.constant dense<0.000000e+00> : vector<8x96xf32>
    %6 = tpu.matmul %3, %5, %cst {dimension_numbers = #tpu.dot_dimension_numbers<[1], [0], [0], [1], [0, 0, 1, 1], [], []>} : vector<8x32xbf16>, vector<32x96xbf16>, vector<8x96xf32> -> vector<8x96xf32>
    %c0_5 = arith.constant 0 : index
    %c0_6 = arith.constant 0 : index
    %c0_7 = arith.constant 0 : index
    %7 = vector.load %arg6[%c0_5, %c0_6, %c0_7] : memref<1x1x96xf32, #tpu.memory_space<vmem>>, vector<1x1x96xf32>
    %8 = vector.shape_cast %7 : vector<1x1x96xf32> to vector<1x96xf32>
    %9 = vector.broadcast %8 : vector<1x96xf32> to vector<8x96xf32>
    %10 = arith.addf %6, %9 : vector<8x96xf32>
    %11 = arith.truncf %10 : vector<8x96xf32> to vector<8x96xbf16>
    %12 = vector.extract_strided_slice %11 {offsets = [0, 0], sizes = [8, 32], strides = [1, 1]} : vector<8x96xbf16> to vector<8x32xbf16>
    %13 = vector.extract_strided_slice %11 {offsets = [0, 32], sizes = [8, 32], strides = [1, 1]} : vector<8x96xbf16> to vector<8x32xbf16>
    %14 = vector.extract_strided_slice %11 {offsets = [0, 64], sizes = [8, 32], strides = [1, 1]} : vector<8x96xbf16> to vector<8x32xbf16>
    %15 = vector.extract_strided_slice %12 {offsets = [0, 0], sizes = [8, 8], strides = [1, 1]} : vector<8x32xbf16> to vector<8x8xbf16>
    %16 = vector.extract_strided_slice %13 {offsets = [0, 0], sizes = [8, 8], strides = [1, 1]} : vector<8x32xbf16> to vector<8x8xbf16>
    %17 = vector.extract_strided_slice %14 {offsets = [0, 0], sizes = [8, 8], strides = [1, 1]} : vector<8x32xbf16> to vector<8x8xbf16>
    %cst_8 = arith.constant -1.000000e+30 : f32
    %18 = vector.broadcast %cst_8 : f32 to vector<8x1xf32>
    %cst_9 = arith.constant 0.000000e+00 : f32
    %19 = vector.broadcast %cst_9 : f32 to vector<8x1xf32>
    %cst_10 = arith.constant 0.000000e+00 : f32
    %20 = vector.broadcast %cst_10 : f32 to vector<8x8xf32>
    %21 = tpu.iota {dimensions = array<i32: 0>} : vector<8x1xi32>
    %cst_11 = arith.constant dense<0.000000e+00> : vector<8x8xf32>
    %22 = tpu.matmul %15, %16, %cst_11 {dimension_numbers = #tpu.dot_dimension_numbers<[1], [1], [0], [0], [0, 0, 1, 0], [], []>} : vector<8x8xbf16>, vector<8x8xbf16>, vector<8x8xf32> -> vector<8x8xf32>
    %23 = tpu.iota {dimensions = array<i32: 1>} : vector<1x8xi32>
    %c0_i32_12 = arith.constant 0 : i32
    %24 = vector.broadcast %c0_i32_12 : i32 to vector<1x8xi32>
    %25 = arith.addi %23, %24 : vector<1x8xi32>
    %26 = vector.broadcast %21 : vector<8x1xi32> to vector<8x8xi32>
    %27 = vector.broadcast %25 : vector<1x8xi32> to vector<8x8xi32>
    %28 = arith.cmpi sge, %26, %27 : vector<8x8xi32>
    %cst_13 = arith.constant -1.000000e+30 : f32
    %29 = vector.broadcast %cst_13 : f32 to vector<8x8xf32>
    %30 = arith.select %28, %22, %29 : vector<8x8xi1>, vector<8x8xf32>
    %cst_14 = arith.constant dense<0xFF800000> : vector<8xf32>
    %31 = vector.multi_reduction <maximumf>, %30, %cst_14 [1] : vector<8x8xf32> to vector<8xf32>
    %32 = vector.shape_cast %31 : vector<8xf32> to vector<8x1xf32>
    %33 = arith.maximumf %18, %32 : vector<8x1xf32>
    %34 = arith.subf %18, %33 : vector<8x1xf32>
    %35 = math.exp %34 : vector<8x1xf32>
    %36 = vector.broadcast %33 : vector<8x1xf32> to vector<8x8xf32>
    %37 = arith.subf %30, %36 : vector<8x8xf32>
    %38 = math.exp %37 : vector<8x8xf32>
    %39 = arith.mulf %35, %19 : vector<8x1xf32>
    %cst_15 = arith.constant dense<0.000000e+00> : vector<8xf32>
    %40 = vector.multi_reduction <add>, %38, %cst_15 [1] : vector<8x8xf32> to vector<8xf32>
    %41 = vector.shape_cast %40 : vector<8xf32> to vector<8x1xf32>
    %42 = arith.addf %39, %41 : vector<8x1xf32>
    %43 = vector.broadcast %35 : vector<8x1xf32> to vector<8x8xf32>
    %44 = arith.mulf %43, %20 : vector<8x8xf32>
    %45 = arith.truncf %38 : vector<8x8xf32> to vector<8x8xbf16>
    %cst_16 = arith.constant dense<0.000000e+00> : vector<8x8xf32>
    %46 = tpu.matmul %45, %17, %cst_16 {dimension_numbers = #tpu.dot_dimension_numbers<[1], [0], [0], [1], [0, 0, 1, 1], [], []>} : vector<8x8xbf16>, vector<8x8xbf16>, vector<8x8xf32> -> vector<8x8xf32>
    %47 = arith.addf %44, %46 : vector<8x8xf32>
    %48 = tpu.reciprocal %42 {approx = true} : vector<8x1xf32> -> vector<8x1xf32>
    %49 = vector.broadcast %48 : vector<8x1xf32> to vector<8x8xf32>
    %50 = arith.mulf %47, %49 : vector<8x8xf32>
    %51 = arith.truncf %50 : vector<8x8xf32> to vector<8x8xbf16>
    %52 = vector.extract_strided_slice %12 {offsets = [0, 8], sizes = [8, 8], strides = [1, 1]} : vector<8x32xbf16> to vector<8x8xbf16>
    %53 = vector.extract_strided_slice %13 {offsets = [0, 8], sizes = [8, 8], strides = [1, 1]} : vector<8x32xbf16> to vector<8x8xbf16>
    %54 = vector.extract_strided_slice %14 {offsets = [0, 8], sizes = [8, 8], strides = [1, 1]} : vector<8x32xbf16> to vector<8x8xbf16>
    %cst_17 = arith.constant -1.000000e+30 : f32
    %55 = vector.broadcast %cst_17 : f32 to vector<8x1xf32>
    %cst_18 = arith.constant 0.000000e+00 : f32
    %56 = vector.broadcast %cst_18 : f32 to vector<8x1xf32>
    %cst_19 = arith.constant 0.000000e+00 : f32
    %57 = vector.broadcast %cst_19 : f32 to vector<8x8xf32>
    %58 = tpu.iota {dimensions = array<i32: 0>} : vector<8x1xi32>
    %cst_20 = arith.constant dense<0.000000e+00> : vector<8x8xf32>
    %59 = tpu.matmul %52, %53, %cst_20 {dimension_numbers = #tpu.dot_dimension_numbers<[1], [1], [0], [0], [0, 0, 1, 0], [], []>} : vector<8x8xbf16>, vector<8x8xbf16>, vector<8x8xf32> -> vector<8x8xf32>
    %60 = tpu.iota {dimensions = array<i32: 1>} : vector<1x8xi32>
    %c0_i32_21 = arith.constant 0 : i32
    %61 = vector.broadcast %c0_i32_21 : i32 to vector<1x8xi32>
    %62 = arith.addi %60, %61 : vector<1x8xi32>
    %63 = vector.broadcast %58 : vector<8x1xi32> to vector<8x8xi32>
    %64 = vector.broadcast %62 : vector<1x8xi32> to vector<8x8xi32>
    %65 = arith.cmpi sge, %63, %64 : vector<8x8xi32>
    %cst_22 = arith.constant -1.000000e+30 : f32
    %66 = vector.broadcast %cst_22 : f32 to vector<8x8xf32>
    %67 = arith.select %65, %59, %66 : vector<8x8xi1>, vector<8x8xf32>
    %cst_23 = arith.constant dense<0xFF800000> : vector<8xf32>
    %68 = vector.multi_reduction <maximumf>, %67, %cst_23 [1] : vector<8x8xf32> to vector<8xf32>
    %69 = vector.shape_cast %68 : vector<8xf32> to vector<8x1xf32>
    %70 = arith.maximumf %55, %69 : vector<8x1xf32>
    %71 = arith.subf %55, %70 : vector<8x1xf32>
    %72 = math.exp %71 : vector<8x1xf32>
    %73 = vector.broadcast %70 : vector<8x1xf32> to vector<8x8xf32>
    %74 = arith.subf %67, %73 : vector<8x8xf32>
    %75 = math.exp %74 : vector<8x8xf32>
    %76 = arith.mulf %72, %56 : vector<8x1xf32>
    %cst_24 = arith.constant dense<0.000000e+00> : vector<8xf32>
    %77 = vector.multi_reduction <add>, %75, %cst_24 [1] : vector<8x8xf32> to vector<8xf32>
    %78 = vector.shape_cast %77 : vector<8xf32> to vector<8x1xf32>
    %79 = arith.addf %76, %78 : vector<8x1xf32>
    %80 = vector.broadcast %72 : vector<8x1xf32> to vector<8x8xf32>
    %81 = arith.mulf %80, %57 : vector<8x8xf32>
    %82 = arith.truncf %75 : vector<8x8xf32> to vector<8x8xbf16>
    %cst_25 = arith.constant dense<0.000000e+00> : vector<8x8xf32>
    %83 = tpu.matmul %82, %54, %cst_25 {dimension_numbers = #tpu.dot_dimension_numbers<[1], [0], [0], [1], [0, 0, 1, 1], [], []>} : vector<8x8xbf16>, vector<8x8xbf16>, vector<8x8xf32> -> vector<8x8xf32>
    %84 = arith.addf %81, %83 : vector<8x8xf32>
    %85 = tpu.reciprocal %79 {approx = true} : vector<8x1xf32> -> vector<8x1xf32>
    %86 = vector.broadcast %85 : vector<8x1xf32> to vector<8x8xf32>
    %87 = arith.mulf %84, %86 : vector<8x8xf32>
    %88 = arith.truncf %87 : vector<8x8xf32> to vector<8x8xbf16>
    %89 = vector.extract_strided_slice %12 {offsets = [0, 16], sizes = [8, 8], strides = [1, 1]} : vector<8x32xbf16> to vector<8x8xbf16>
    %90 = vector.extract_strided_slice %13 {offsets = [0, 16], sizes = [8, 8], strides = [1, 1]} : vector<8x32xbf16> to vector<8x8xbf16>
    %91 = vector.extract_strided_slice %14 {offsets = [0, 16], sizes = [8, 8], strides = [1, 1]} : vector<8x32xbf16> to vector<8x8xbf16>
    %cst_26 = arith.constant -1.000000e+30 : f32
    %92 = vector.broadcast %cst_26 : f32 to vector<8x1xf32>
    %cst_27 = arith.constant 0.000000e+00 : f32
    %93 = vector.broadcast %cst_27 : f32 to vector<8x1xf32>
    %cst_28 = arith.constant 0.000000e+00 : f32
    %94 = vector.broadcast %cst_28 : f32 to vector<8x8xf32>
    %95 = tpu.iota {dimensions = array<i32: 0>} : vector<8x1xi32>
    %cst_29 = arith.constant dense<0.000000e+00> : vector<8x8xf32>
    %96 = tpu.matmul %89, %90, %cst_29 {dimension_numbers = #tpu.dot_dimension_numbers<[1], [1], [0], [0], [0, 0, 1, 0], [], []>} : vector<8x8xbf16>, vector<8x8xbf16>, vector<8x8xf32> -> vector<8x8xf32>
    %97 = tpu.iota {dimensions = array<i32: 1>} : vector<1x8xi32>
    %c0_i32_30 = arith.constant 0 : i32
    %98 = vector.broadcast %c0_i32_30 : i32 to vector<1x8xi32>
    %99 = arith.addi %97, %98 : vector<1x8xi32>
    %100 = vector.broadcast %95 : vector<8x1xi32> to vector<8x8xi32>
    %101 = vector.broadcast %99 : vector<1x8xi32> to vector<8x8xi32>
    %102 = arith.cmpi sge, %100, %101 : vector<8x8xi32>
    %cst_31 = arith.constant -1.000000e+30 : f32
    %103 = vector.broadcast %cst_31 : f32 to vector<8x8xf32>
    %104 = arith.select %102, %96, %103 : vector<8x8xi1>, vector<8x8xf32>
    %cst_32 = arith.constant dense<0xFF800000> : vector<8xf32>
    %105 = vector.multi_reduction <maximumf>, %104, %cst_32 [1] : vector<8x8xf32> to vector<8xf32>
    %106 = vector.shape_cast %105 : vector<8xf32> to vector<8x1xf32>
    %107 = arith.maximumf %92, %106 : vector<8x1xf32>
    %108 = arith.subf %92, %107 : vector<8x1xf32>
    %109 = math.exp %108 : vector<8x1xf32>
    %110 = vector.broadcast %107 : vector<8x1xf32> to vector<8x8xf32>
    %111 = arith.subf %104, %110 : vector<8x8xf32>
    %112 = math.exp %111 : vector<8x8xf32>
    %113 = arith.mulf %109, %93 : vector<8x1xf32>
    %cst_33 = arith.constant dense<0.000000e+00> : vector<8xf32>
    %114 = vector.multi_reduction <add>, %112, %cst_33 [1] : vector<8x8xf32> to vector<8xf32>
    %115 = vector.shape_cast %114 : vector<8xf32> to vector<8x1xf32>
    %116 = arith.addf %113, %115 : vector<8x1xf32>
    %117 = vector.broadcast %109 : vector<8x1xf32> to vector<8x8xf32>
    %118 = arith.mulf %117, %94 : vector<8x8xf32>
    %119 = arith.truncf %112 : vector<8x8xf32> to vector<8x8xbf16>
    %cst_34 = arith.constant dense<0.000000e+00> : vector<8x8xf32>
    %120 = tpu.matmul %119, %91, %cst_34 {dimension_numbers = #tpu.dot_dimension_numbers<[1], [0], [0], [1], [0, 0, 1, 1], [], []>} : vector<8x8xbf16>, vector<8x8xbf16>, vector<8x8xf32> -> vector<8x8xf32>
    %121 = arith.addf %118, %120 : vector<8x8xf32>
    %122 = tpu.reciprocal %116 {approx = true} : vector<8x1xf32> -> vector<8x1xf32>
    %123 = vector.broadcast %122 : vector<8x1xf32> to vector<8x8xf32>
    %124 = arith.mulf %121, %123 : vector<8x8xf32>
    %125 = arith.truncf %124 : vector<8x8xf32> to vector<8x8xbf16>
    %126 = vector.extract_strided_slice %12 {offsets = [0, 24], sizes = [8, 8], strides = [1, 1]} : vector<8x32xbf16> to vector<8x8xbf16>
    %127 = vector.extract_strided_slice %13 {offsets = [0, 24], sizes = [8, 8], strides = [1, 1]} : vector<8x32xbf16> to vector<8x8xbf16>
    %128 = vector.extract_strided_slice %14 {offsets = [0, 24], sizes = [8, 8], strides = [1, 1]} : vector<8x32xbf16> to vector<8x8xbf16>
    %cst_35 = arith.constant -1.000000e+30 : f32
    %129 = vector.broadcast %cst_35 : f32 to vector<8x1xf32>
    %cst_36 = arith.constant 0.000000e+00 : f32
    %130 = vector.broadcast %cst_36 : f32 to vector<8x1xf32>
    %cst_37 = arith.constant 0.000000e+00 : f32
    %131 = vector.broadcast %cst_37 : f32 to vector<8x8xf32>
    %132 = tpu.iota {dimensions = array<i32: 0>} : vector<8x1xi32>
    %cst_38 = arith.constant dense<0.000000e+00> : vector<8x8xf32>
    %133 = tpu.matmul %126, %127, %cst_38 {dimension_numbers = #tpu.dot_dimension_numbers<[1], [1], [0], [0], [0, 0, 1, 0], [], []>} : vector<8x8xbf16>, vector<8x8xbf16>, vector<8x8xf32> -> vector<8x8xf32>
    %134 = tpu.iota {dimensions = array<i32: 1>} : vector<1x8xi32>
    %c0_i32_39 = arith.constant 0 : i32
    %135 = vector.broadcast %c0_i32_39 : i32 to vector<1x8xi32>
    %136 = arith.addi %134, %135 : vector<1x8xi32>
    %137 = vector.broadcast %132 : vector<8x1xi32> to vector<8x8xi32>
    %138 = vector.broadcast %136 : vector<1x8xi32> to vector<8x8xi32>
    %139 = arith.cmpi sge, %137, %138 : vector<8x8xi32>
    %cst_40 = arith.constant -1.000000e+30 : f32
    %140 = vector.broadcast %cst_40 : f32 to vector<8x8xf32>
    %141 = arith.select %139, %133, %140 : vector<8x8xi1>, vector<8x8xf32>
    %cst_41 = arith.constant dense<0xFF800000> : vector<8xf32>
    %142 = vector.multi_reduction <maximumf>, %141, %cst_41 [1] : vector<8x8xf32> to vector<8xf32>
    %143 = vector.shape_cast %142 : vector<8xf32> to vector<8x1xf32>
    %144 = arith.maximumf %129, %143 : vector<8x1xf32>
    %145 = arith.subf %129, %144 : vector<8x1xf32>
    %146 = math.exp %145 : vector<8x1xf32>
    %147 = vector.broadcast %144 : vector<8x1xf32> to vector<8x8xf32>
    %148 = arith.subf %141, %147 : vector<8x8xf32>
    %149 = math.exp %148 : vector<8x8xf32>
    %150 = arith.mulf %146, %130 : vector<8x1xf32>
    %cst_42 = arith.constant dense<0.000000e+00> : vector<8xf32>
    %151 = vector.multi_reduction <add>, %149, %cst_42 [1] : vector<8x8xf32> to vector<8xf32>
    %152 = vector.shape_cast %151 : vector<8xf32> to vector<8x1xf32>
    %153 = arith.addf %150, %152 : vector<8x1xf32>
    %154 = vector.broadcast %146 : vector<8x1xf32> to vector<8x8xf32>
    %155 = arith.mulf %154, %131 : vector<8x8xf32>
    %156 = arith.truncf %149 : vector<8x8xf32> to vector<8x8xbf16>
    %cst_43 = arith.constant dense<0.000000e+00> : vector<8x8xf32>
    %157 = tpu.matmul %156, %128, %cst_43 {dimension_numbers = #tpu.dot_dimension_numbers<[1], [0], [0], [1], [0, 0, 1, 1], [], []>} : vector<8x8xbf16>, vector<8x8xbf16>, vector<8x8xf32> -> vector<8x8xf32>
    %158 = arith.addf %155, %157 : vector<8x8xf32>
    %159 = tpu.reciprocal %153 {approx = true} : vector<8x1xf32> -> vector<8x1xf32>
    %160 = vector.broadcast %159 : vector<8x1xf32> to vector<8x8xf32>
    %161 = arith.mulf %158, %160 : vector<8x8xf32>
    %162 = arith.truncf %161 : vector<8x8xf32> to vector<8x8xbf16>
    %163 = tpu.concatenate %51, %88, %125, %162 in 1 : vector<8x8xbf16>, vector<8x8xbf16>, vector<8x8xbf16>, vector<8x8xbf16> -> vector<8x32xbf16>
    %c0_44 = arith.constant 0 : index
    %c0_45 = arith.constant 0 : index
    %c0_46 = arith.constant 0 : index
    %164 = vector.load %arg9[%c0_44, %c0_45, %c0_46] : memref<1x8x32xf32, #tpu.memory_space<vmem>>, vector<1x8x32xf32>
    %165 = vector.shape_cast %164 : vector<1x8x32xf32> to vector<8x32xf32>
    %c0_47 = arith.constant 0 : index
    %c0_48 = arith.constant 0 : index
    %c0_49 = arith.constant 0 : index
    %166 = vector.load %arg7[%c0_47, %c0_48, %c0_49] : memref<1x32x32xbf16, #tpu.memory_space<vmem>>, vector<1x32x32xbf16>
    %167 = vector.shape_cast %166 : vector<1x32x32xbf16> to vector<32x32xbf16>
    %cst_50 = arith.constant dense<0.000000e+00> : vector<8x32xf32>
    %168 = tpu.matmul %163, %167, %cst_50 {dimension_numbers = #tpu.dot_dimension_numbers<[1], [0], [0], [1], [0, 0, 1, 1], [], []>} : vector<8x32xbf16>, vector<32x32xbf16>, vector<8x32xf32> -> vector<8x32xf32>
    %169 = arith.addf %165, %168 : vector<8x32xf32>
    %c0_51 = arith.constant 0 : index
    %c0_52 = arith.constant 0 : index
    %c0_53 = arith.constant 0 : index
    %170 = vector.load %arg9[%c0_51, %c0_52, %c0_53] : memref<1x8x32xf32, #tpu.memory_space<vmem>>, vector<1x8x32xf32>
    %171 = vector.shape_cast %170 : vector<1x8x32xf32> to vector<8x32xf32>
    %172 = vector.shape_cast %169 : vector<8x32xf32> to vector<1x8x32xf32>
    tpu.vector_store %arg9[%c0_51, %c0_52, %c0_53], %172 {strides = array<i32>} : memref<1x8x32xf32, #tpu.memory_space<vmem>>, vector<1x8x32xf32>,
    return
  }
  func.func @transform_0(%arg0: i32, %arg1: i32) -> (i32, i32, i32) {
    %c0_i32 = arith.constant 0 : i32
    %c0_i32_0 = arith.constant 0 : i32
    %c0_i32_1 = arith.constant 0 : i32
    return %arg0, %c0_i32, %c0_i32_0 : i32, i32, i32
  }
  func.func @transform_1(%arg0: i32, %arg1: i32) -> (i32, i32) {
    %c0_i32 = arith.constant 0 : i32
    %c0_i32_0 = arith.constant 0 : i32
    %c0_i32_1 = arith.constant 0 : i32
    return %c0_i32, %c0_i32_0 : i32, i32
  }
  func.func @transform_2(%arg0: i32, %arg1: i32) -> (i32, i32) {
    %c0_i32 = arith.constant 0 : i32
    %c0_i32_0 = arith.constant 0 : i32
    %c0_i32_1 = arith.constant 0 : i32
    return %c0_i32, %c0_i32_0 : i32, i32
  }
  func.func @transform_3(%arg0: i32, %arg1: i32) -> (i32, i32, i32) {
    %c0_i32 = arith.constant 0 : i32
    %c0_i32_0 = arith.constant 0 : i32
    %c0_i32_1 = arith.constant 0 : i32
    return %arg1, %c0_i32, %c0_i32_0 : i32, i32, i32
  }
  func.func @transform_4(%arg0: i32, %arg1: i32) -> (i32, i32, i32) {
    %c0_i32 = arith.constant 0 : i32
    %c0_i32_0 = arith.constant 0 : i32
    %c0_i32_1 = arith.constant 0 : i32
    return %arg1, %c0_i32, %c0_i32_0 : i32, i32, i32
  }
  func.func @transform_5(%arg0: i32, %arg1: i32) -> (i32, i32, i32) {
    %c0_i32 = arith.constant 0 : i32
    %c0_i32_0 = arith.constant 0 : i32
    %c0_i32_1 = arith.constant 0 : i32
    return %arg1, %c0_i32, %c0_i32_0 : i32, i32, i32
  }
  func.func @transform_6(%arg0: i32, %arg1: i32) -> (i32, i32) {
    %c0_i32 = arith.constant 0 : i32
    %c0_i32_0 = arith.constant 0 : i32
    %c0_i32_1 = arith.constant 0 : i32
    return %c0_i32, %c0_i32_0 : i32, i32
  }
  func.func @transform_7(%arg0: i32, %arg1: i32) -> (i32, i32, i32) {
    %c0_i32 = arith.constant 0 : i32
    %c0_i32_0 = arith.constant 0 : i32
    %c0_i32_1 = arith.constant 0 : i32
    return %arg0, %c0_i32, %c0_i32_0 : i32, i32, i32
  }
}

</mosaic_0001>

<llo_original>
// kernel: tpu_custom_call.1
$region0: #{tpu_custom_call.1}
  #allocation0 [shape = 'u32[]', space=smem, size = 0x4, offset = 0x4, fixed_abs, tag = 'smem constant byte address 0x4 - core index']
  #allocation1 [shape = 'u32[144,128]{1,0:T(1,128)}', space=vmem, size = 0x12000, scoped, tag = 'internal scratch']
  #allocation2 [shape = 'bf16[8,32]{1,0:T(8,128)(2,1)}', space=vmem, size = 0x800, scoped, tag = 'scratch operand']
  %s0 = inlined_call_operand.hbm [shape: f32[2,8,32], index: 0, kind: input, shape index: {}]
  %s1 = inlined_call_operand.vmem [shape: f32[1,32], index: 1, kind: input, shape index: {}]
  %s2 = inlined_call_operand.vmem [shape: f32[1,32], index: 2, kind: input, shape index: {}]
  %s3 = inlined_call_operand.hbm [shape: bf16[1,32,96], index: 3, kind: input, shape index: {}]
  %s4 = inlined_call_operand.vmem [shape: f32[1,1,96], index: 4, kind: input, shape index: {}]
  %s5 = inlined_call_operand.hbm [shape: bf16[1,32,32], index: 5, kind: input, shape index: {}]
  %s6 = inlined_call_operand.vmem [shape: f32[1,32], index: 6, kind: input, shape index: {}]
  %s7 = inlined_call_operand.hbm [shape: f32[2,8,32], index: 7, kind: output, shape index: {}]
  %s8 = sld [smem:[#allocation0]]
  $region77: #{tpu_custom_call.1} parent=0
    _
  %s10 = ssub.s32 1, %s8
  %s11 = scalar_select 0, %s10, %s8
  $region1: #{tpu_custom_call.1} parent=0
    #allocation3 [shape = 'u8[8192]{0}', space=vmem, size = 0x2000, scoped, tag = 'input window, operand 0']
    #allocation4 [shape = 's32[2]{0}', space=sflag, size = 0x8, scoped, tag = 'scoped memory for tpu_custom_call.1']
    #allocation5 [shape = 's32[2]{0}', space=sflag, size = 0x8, scoped, tag = 'scoped memory for tpu_custom_call.1']
    #allocation6 [shape = 'u8[8192]{0}', space=vmem, size = 0x2000, scoped, tag = 'input window, operand 3, single buffered']
    #allocation7 [shape = 's32[1]{0}', space=sflag, size = 0x4, scoped, tag = 'scoped memory for tpu_custom_call.1']
    #allocation8 [shape = 'u8[8192]{0}', space=vmem, size = 0x2000, scoped, tag = 'input window, operand 5, single buffered']
    #allocation9 [shape = 'u8[8192]{0}', space=vmem, size = 0x2000, scoped, tag = 'output window, operand 0']
    %12 = vsyncpa [#allocation4], 0
    %s13 = scalar_lea.sflag [#allocation4], 1
    %14 = vsyncpa %s13, 0
    %15 = vsyncpa [#allocation7], 0
    %16 = vsyncpa [#allocation5], 0
    %s17 = scalar_lea.sflag [#allocation5], 1
    %18 = vsyncpa %s17, 0
    loop: start=0, step=1, limit=4
    $region2: #{tpu_custom_call.1} parent=1 // loop_pre_header
      _
    $region3: #{tpu_custom_call.1} parent=1 // loop_header
      %s20 = sphi 0, %s24
      %p21 = scmp.ge.s32.totalorder %s20, 4
      %s27 = sphi 0, %s39
      %s28 = sphi 0, %s35
      %s29 = sphi 0, %s27
      %s30 = sphi 0, %s28
      %s31 = sphi 0, %s29
      %s32 = sphi 0, %s30
      %s42 = sphi 0, %s44
      %s45 = sphi 0, %s42
      %s46 = sphi 0, %s45
      %s62 = sphi 0, %s46
      %s66 = sphi 0, %s66
      %s68 = sphi 0, %s66
      %s69 = sphi 0, %s68
      %s83 = sphi 0, %s69
      %s87 = sphi 0, %s87
      %s89 = sphi 0, %s87
      %s90 = sphi 0, %s89
      %s104 = sphi 0, %s90
      %s110 = sphi 0, %s112
      %s113 = sphi 0, %s110
      %s114 = sphi 0, %s113
      %s130 = sphi 0, %s114
      %s136 = sphi 0, %s138
      %s139 = sphi 0, %s136
      %s140 = sphi 0, %s139
      %s156 = sphi 0, %s140
      %s162 = sphi 0, %s164
      %s165 = sphi 0, %s162
      %s166 = sphi 0, %s165
      %s182 = sphi 0, %s166
      %s186 = sphi 0, %s186
      %s188 = sphi 0, %s186
      %s189 = sphi 0, %s188
      %s203 = sphi 0, %s189
      %s209 = sphi 0, %s211
      %s212 = sphi 0, %s209
      %s213 = sphi 0, %s212
      %s229 = sphi 0, %s213
    $region4: #{tpu_custom_call.1} parent=1 // loop_header_branch
      %23 = sbr.rel (%p21) target = $region8
    $region5: #{tpu_custom_call.1} parent=1 // loop_body
      %s25 = ssub.s32 %s20, 1
      %s26 = ssub.s32 %s20, 2
      %s33 = sadd.s32 1, %s28
      %p34 = scmp.ge.s32.totalorder %s33, 1
      %s35 = scalar_select %p34, 0, %s33
      %s36 = sadd.s32 1, %s27
      %s37 = scalar_select %p34, %s36, %s27
      %p38 = scmp.ge.s32.totalorder %s37, 2
      %s39 = scalar_select %p38, 0, %s37
      %s40 = ssub.s32 %s27, %s39
      %p41 = scmp.eq.s32.totalorder %s40, 0
      %s43 = sadd.s32 %s42, 1
      %s44 = scalar_select %p41, %s42, %s43
      %p47 = pneg %p41
      %p48 = scmp.eq.s32.totalorder %s20, 1
      %p49 = por %p47, %p48
      %p50 = scmp.ne.s32.totalorder %s42, %s45
      %p51 = scmp.eq.s32.totalorder %s20, 0
      %p52 = por %p50, %p51
      %p53 = scmp.ne.s32.totalorder %s42, %s45
      %p54 = scmp.eq.s32.totalorder %s25, 1
      %p55 = por %p53, %p54
      %p56 = scmp.ne.s32.totalorder %s45, %s46
      %p57 = scmp.eq.s32.totalorder %s25, 0
      %p58 = por %p56, %p57
      %p59 = scmp.ne.s32.totalorder %s45, %s46
      %p60 = scmp.eq.s32.totalorder %s26, 1
      %p61 = por %p59, %p60
      %p63 = scmp.ne.s32.totalorder %s46, %s62
      %p64 = scmp.eq.s32.totalorder %s26, 0
      %p65 = por %p63, %p64
      %s67 = sadd.s32 %s66, 1
      %p70 = scmp.eq.s32.totalorder %s20, 1
      %p71 = scmp.ne.s32.totalorder %s66, %s68
      %p72 = scmp.eq.s32.totalorder %s20, 0
      %p73 = por %p71, %p72
      %p74 = scmp.ne.s32.totalorder %s66, %s68
      %p75 = scmp.eq.s32.totalorder %s25, 1
      %p76 = por %p74, %p75
      %p77 = scmp.ne.s32.totalorder %s68, %s69
      %p78 = scmp.eq.s32.totalorder %s25, 0
      %p79 = por %p77, %p78
      %p80 = scmp.ne.s32.totalorder %s68, %s69
      %p81 = scmp.eq.s32.totalorder %s26, 1
      %p82 = por %p80, %p81
      %p84 = scmp.ne.s32.totalorder %s69, %s83
      %p85 = scmp.eq.s32.totalorder %s26, 0
      %p86 = por %p84, %p85
      %s88 = sadd.s32 %s87, 1
      %p91 = scmp.eq.s32.totalorder %s20, 1
      %p92 = scmp.ne.s32.totalorder %s87, %s89
      %p93 = scmp.eq.s32.totalorder %s20, 0
      %p94 = por %p92, %p93
      %p95 = scmp.ne.s32.totalorder %s87, %s89
      %p96 = scmp.eq.s32.totalorder %s25, 1
      %p97 = por %p95, %p96
      %p98 = scmp.ne.s32.totalorder %s89, %s90
      %p99 = scmp.eq.s32.totalorder %s25, 0
      %p100 = por %p98, %p99
      %p101 = scmp.ne.s32.totalorder %s89, %s90
      %p102 = scmp.eq.s32.totalorder %s26, 1
      %p103 = por %p101, %p102
      %p105 = scmp.ne.s32.totalorder %s90, %s104
      %p106 = scmp.eq.s32.totalorder %s26, 0
      %p107 = por %p105, %p106
      %s108 = ssub.s32 %s28, %s35
      %p109 = scmp.eq.s32.totalorder %s108, 0
      %s111 = sadd.s32 %s110, 1
      %s112 = scalar_select %p109, %s110, %s111
      %p115 = pneg %p109
      %p116 = scmp.eq.s32.totalorder %s20, 1
      %p117 = por %p115, %p116
      %p118 = scmp.ne.s32.totalorder %s110, %s113
      %p119 = scmp.eq.s32.totalorder %s20, 0
      %p120 = por %p118, %p119
      %p121 = scmp.ne.s32.totalorder %s110, %s113
      %p122 = scmp.eq.s32.totalorder %s25, 1
      %p123 = por %p121, %p122
      %p124 = scmp.ne.s32.totalorder %s113, %s114
      %p125 = scmp.eq.s32.totalorder %s25, 0
      %p126 = por %p124, %p125
      %p127 = scmp.ne.s32.totalorder %s113, %s114
      %p128 = scmp.eq.s32.totalorder %s26, 1
      %p129 = por %p127, %p128
      %p131 = scmp.ne.s32.totalorder %s114, %s130
      %p132 = scmp.eq.s32.totalorder %s26, 0
      %p133 = por %p131, %p132
      %s134 = ssub.s32 %s28, %s35
      %p135 = scmp.eq.s32.totalorder %s134, 0
      %s137 = sadd.s32 %s136, 1
      %s138 = scalar_select %p135, %s136, %s137
      %p141 = pneg %p135
      %p142 = scmp.eq.s32.totalorder %s20, 1
      %p143 = por %p141, %p142
      %p144 = scmp.ne.s32.totalorder %s136, %s139
      %p145 = scmp.eq.s32.totalorder %s20, 0
      %p146 = por %p144, %p145
      %p147 = scmp.ne.s32.totalorder %s136, %s139
      %p148 = scmp.eq.s32.totalorder %s25, 1
      %p149 = por %p147, %p148
      %p150 = scmp.ne.s32.totalorder %s139, %s140
      %p151 = scmp.eq.s32.totalorder %s25, 0
      %p152 = por %p150, %p151
      %p153 = scmp.ne.s32.totalorder %s139, %s140
      %p154 = scmp.eq.s32.totalorder %s26, 1
      %p155 = por %p153, %p154
      %p157 = scmp.ne.s32.totalorder %s140, %s156
      %p158 = scmp.eq.s32.totalorder %s26, 0
      %p159 = por %p157, %p158
      %s160 = ssub.s32 %s28, %s35
      %p161 = scmp.eq.s32.totalorder %s160, 0
      %s163 = sadd.s32 %s162, 1
      %s164 = scalar_select %p161, %s162, %s163
      %p167 = pneg %p161
      %p168 = scmp.eq.s32.totalorder %s20, 1
      %p169 = por %p167, %p168
      %p170 = scmp.ne.s32.totalorder %s162, %s165
      %p171 = scmp.eq.s32.totalorder %s20, 0
      %p172 = por %p170, %p171
      %p173 = scmp.ne.s32.totalorder %s162, %s165
      %p174 = scmp.eq.s32.totalorder %s25, 1
      %p175 = por %p173, %p174
      %p176 = scmp.ne.s32.totalorder %s165, %s166
      %p177 = scmp.eq.s32.totalorder %s25, 0
      %p178 = por %p176, %p177
      %p179 = scmp.ne.s32.totalorder %s165, %s166
      %p180 = scmp.eq.s32.totalorder %s26, 1
      %p181 = por %p179, %p180
      %p183 = scmp.ne.s32.totalorder %s166, %s182
      %p184 = scmp.eq.s32.totalorder %s26, 0
      %p185 = por %p183, %p184
      %s187 = sadd.s32 %s186, 1
      %p190 = scmp.eq.s32.totalorder %s20, 1
      %p191 = scmp.ne.s32.totalorder %s186, %s188
      %p192 = scmp.eq.s32.totalorder %s20, 0
      %p193 = por %p191, %p192
      %p194 = scmp.ne.s32.totalorder %s186, %s188
      %p195 = scmp.eq.s32.totalorder %s25, 1
      %p196 = por %p194, %p195
      %p197 = scmp.ne.s32.totalorder %s188, %s189
      %p198 = scmp.eq.s32.totalorder %s25, 0
      %p199 = por %p197, %p198
      %p200 = scmp.ne.s32.totalorder %s188, %s189
      %p201 = scmp.eq.s32.totalorder %s26, 1
      %p202 = por %p200, %p201
      %p204 = scmp.ne.s32.totalorder %s189, %s203
      %p205 = scmp.eq.s32.totalorder %s26, 0
      %p206 = por %p204, %p205
      %s207 = ssub.s32 %s27, %s39
      %p208 = scmp.eq.s32.totalorder %s207, 0
      %s210 = sadd.s32 %s209, 1
      %s211 = scalar_select %p208, %s209, %s210
      %p214 = pneg %p208
      %p215 = scmp.eq.s32.totalorder %s20, 1
      %p216 = por %p214, %p215
      %p217 = scmp.ne.s32.totalorder %s209, %s212
      %p218 = scmp.eq.s32.totalorder %s20, 0
      %p219 = por %p217, %p218
      %p220 = scmp.ne.s32.totalorder %s209, %s212
      %p221 = scmp.eq.s32.totalorder %s25, 1
      %p222 = por %p220, %p221
      %p223 = scmp.ne.s32.totalorder %s212, %s213
      %p224 = scmp.eq.s32.totalorder %s25, 0
      %p225 = por %p223, %p224
      %p226 = scmp.ne.s32.totalorder %s212, %s213
      %p227 = scmp.eq.s32.totalorder %s26, 1
      %p228 = por %p226, %p227
      %p230 = scmp.ne.s32.totalorder %s213, %s229
      %p231 = scmp.eq.s32.totalorder %s26, 0
      %p232 = por %p230, %p231
      %p233 = scmp.le.s32.totalorder 1, %s20
      %p234 = scmp.lt.s32.totalorder %s20, 3
      %p235 = pnand %p233, %p234
      %p236 = pneg %p235
      // Predicated region
      $region9: #{tpu_custom_call.1} parent=5 // pred_check
        _
      $region10: #{tpu_custom_call.1} parent=5 // pred_check_branch
        %238 = sbr.rel (%p235) target = $region12
      $region11: #{tpu_custom_call.1} parent=5 // pred_region
        %s239 = ssub.s32 %s20, 1
        // Predicated region
        $region13: #{tpu_custom_call.1} parent=11 // pred_check
          %p240 = pneg %p79
        $region14: #{tpu_custom_call.1} parent=11 // pred_check_branch
          %242 = sbr.rel (%p240) target = $region16
        $region15: #{tpu_custom_call.1} parent=11 // pred_region
          _
        $region16: #{tpu_custom_call.1} parent=11 // pred_fallthru
          _
        // Predicated region
        $region17: #{tpu_custom_call.1} parent=11 // pred_check
          %p243 = pneg %p100
        $region18: #{tpu_custom_call.1} parent=11 // pred_check_branch
          %245 = sbr.rel (%p243) target = $region20
        $region19: #{tpu_custom_call.1} parent=11 // pred_region
          _
        $region20: #{tpu_custom_call.1} parent=11 // pred_fallthru
          _
        // Predicated region
        $region21: #{tpu_custom_call.1} parent=11 // pred_check
          %p246 = pneg %p126
        $region22: #{tpu_custom_call.1} parent=11 // pred_check_branch
          %248 = sbr.rel (%p246) target = $region24
        $region23: #{tpu_custom_call.1} parent=11 // pred_region
          %s250 = ssub.s32 256, 256
          %251 = vsyncadd [#allocation7], %s250
          %s252 = smul.addr %s30, 4
          %s253 = smul.addr %s252, 64
          %s254 = scalar_lea.hbm %s3, %s253
          %s255 = sshll.u32 [#allocation6], 4
          %s256 = int_to_ptr.vmem [resolvable:$true] %s255
          %261 = dma.hbm_to_vmem [thread:$0]  %s254, 256, %s256, [#allocation7], 64, 64, 4
        $region24: #{tpu_custom_call.1} parent=11 // pred_fallthru
          _
        // Predicated region
        $region25: #{tpu_custom_call.1} parent=11 // pred_check
          %p262 = pneg %p152
        $region26: #{tpu_custom_call.1} parent=11 // pred_check_branch
          %264 = sbr.rel (%p262) target = $region28
        $region27: #{tpu_custom_call.1} parent=11 // pred_region
          %p265 = scmp.lt.s32.totalorder %s30, 0
          %s266 = scalar_select %p265, %s30, 0
          %s267 = scalar_lea.vmem %s4, %s266
        $region28: #{tpu_custom_call.1} parent=11 // pred_fallthru
          _
        // Predicated region
        $region29: #{tpu_custom_call.1} parent=11 // pred_check
          %p268 = pneg %p178
        $region30: #{tpu_custom_call.1} parent=11 // pred_check_branch
          %270 = sbr.rel (%p268) target = $region32
        $region31: #{tpu_custom_call.1} parent=11 // pred_region
          %s272 = ssub.s32 256, 256
          %273 = vsyncadd [#allocation7], %s272
          %s274 = smul.addr %s30, 4
          %s275 = smul.addr %s274, 64
          %s276 = scalar_lea.hbm %s5, %s275
          %s277 = sshll.u32 [#allocation8], 4
          %s278 = int_to_ptr.vmem [resolvable:$true] %s277
          %283 = dma.hbm_to_vmem [thread:$0]  %s276, 256, %s278, [#allocation7], 64, 64, 4
        $region32: #{tpu_custom_call.1} parent=11 // pred_fallthru
          _
        // Predicated region
        $region33: #{tpu_custom_call.1} parent=11 // pred_check
          %p284 = pneg %p199
        $region34: #{tpu_custom_call.1} parent=11 // pred_check_branch
          %286 = sbr.rel (%p284) target = $region36
        $region35: #{tpu_custom_call.1} parent=11 // pred_region
          _
        $region36: #{tpu_custom_call.1} parent=11 // pred_fallthru
          _
      $region12: #{tpu_custom_call.1} parent=5 // pred_fallthru
        _
      %p287 = scmp.lt.s32.totalorder %s20, 2
      // Predicated region
      $region37: #{tpu_custom_call.1} parent=5 // pred_check
        %p288 = pneg %p287
      $region38: #{tpu_custom_call.1} parent=5 // pred_check_branch
        %290 = sbr.rel (%p288) target = $region40
      $region39: #{tpu_custom_call.1} parent=5 // pred_region
        // Predicated region
        $region41: #{tpu_custom_call.1} parent=39 // pred_check
          %p291 = pneg %p52
        $region42: #{tpu_custom_call.1} parent=39 // pred_check_branch
          %293 = sbr.rel (%p291) target = $region44
        $region43: #{tpu_custom_call.1} parent=39 // pred_region
          %s294 = sand.u32 %s42, 1
          %s295 = scalar_lea.sflag [#allocation4], %s294
          %s296 = sand.u32 %s42, 1
          %s297 = smul.addr %s296, 8
          %s298 = scalar_lea.vmem [#allocation3], %s297
          %s300 = ssub.s32 128, 128
          %301 = vsyncadd %s295, %s300
          %s302 = smul.addr %s27, 128
          %s303 = scalar_lea.hbm %s0, %s302
          %s305 = sshll.u32 %s298, 4
          %s306 = int_to_ptr.vmem [resolvable:$true] %s305
          %308 = dma.hbm_to_vmem [thread:$0]  %s303, 128, %s306, %s295
        $region44: #{tpu_custom_call.1} parent=39 // pred_fallthru
          _
      $region40: #{tpu_custom_call.1} parent=5 // pred_fallthru
        _
      %p309 = scmp.le.s32.totalorder 1, %s20
      %p310 = scmp.lt.s32.totalorder %s20, 3
      %p311 = pnand %p309, %p310
      %p312 = pneg %p311
      // Predicated region
      $region45: #{tpu_custom_call.1} parent=5 // pred_check
        _
      $region46: #{tpu_custom_call.1} parent=5 // pred_check_branch
        %314 = sbr.rel (%p311) target = $region48
      $region47: #{tpu_custom_call.1} parent=5 // pred_region
        %s315 = ssub.s32 %s20, 1
        %s316 = sand.u32 %s45, 1
        %s317 = scalar_lea.sflag [#allocation4], %s316
        %s318 = sand.u32 %s45, 1
        %s319 = smul.addr %s318, 8
        %s320 = scalar_lea.vmem [#allocation3], %s319
        // Predicated region
        $region49: #{tpu_custom_call.1} parent=47 // pred_check
          %p321 = pneg %p58
        $region50: #{tpu_custom_call.1} parent=47 // pred_check_branch
          %323 = sbr.rel (%p321) target = $region52
        $region51: #{tpu_custom_call.1} parent=47 // pred_region
          %324 = dma.done %s317, 128
        $region52: #{tpu_custom_call.1} parent=47 // pred_fallthru
          _
        // Predicated region
        $region53: #{tpu_custom_call.1} parent=47 // pred_check
          %p325 = pneg %p126
        $region54: #{tpu_custom_call.1} parent=47 // pred_check_branch
          %327 = sbr.rel (%p325) target = $region56
        $region55: #{tpu_custom_call.1} parent=47 // pred_region
          %328 = dma.done [#allocation7], 256
        $region56: #{tpu_custom_call.1} parent=47 // pred_fallthru
          _
        // Predicated region
        $region57: #{tpu_custom_call.1} parent=47 // pred_check
          %p329 = pneg %p178
        $region58: #{tpu_custom_call.1} parent=47 // pred_check_branch
          %331 = sbr.rel (%p329) target = $region60
        $region59: #{tpu_custom_call.1} parent=47 // pred_region
          %332 = dma.done [#allocation7], 256
        $region60: #{tpu_custom_call.1} parent=47 // pred_fallthru
          _
        %s333 = sand.u32 %s45, 1
        %s334 = scalar_lea.sflag [#allocation4], %s333
        %s335 = sand.u32 %s45, 1
        %s336 = smul.addr %s335, 8
        %s337 = scalar_lea.vmem [#allocation3], %s336
        %p338 = pneg %p58
        %p339 = pneg %p55
        %p340 = pneg %p79
        %p341 = pneg %p76
        %p342 = pneg %p100
        %p343 = pneg %p97
        %p344 = pneg %p126
        %p345 = pneg %p123
        %p346 = scmp.lt.s32.totalorder %s30, 0
        %s347 = scalar_select %p346, %s30, 0
        %s348 = scalar_lea.vmem %s4, %s347
        %p349 = pneg %p152
        %p350 = pneg %p149
        %p351 = pneg %p178
        %p352 = pneg %p175
        %p353 = pneg %p199
        %p354 = pneg %p196
        %p355 = pneg %p225
        %p356 = pneg %p222
        %s357 = sand.u32 %s212, 1
        %s358 = scalar_lea.sflag [#allocation5], %s357
        %s359 = sand.u32 %s212, 1
        %s360 = smul.addr %s359, 8
        %s361 = scalar_lea.vmem [#allocation9], %s360
        %p362 = scmp.lt.s32.totalorder %s30, 0
        %s363 = scalar_select %p362, %s30, 0
        %s364 = scalar_lea.vmem %s4, %s363
        %p366 = scmp.eq.s32.totalorder %s30, 0
        // Predicated region
        $region61: #{tpu_custom_call.1} parent=47 // pred_check
          %p367 = pneg %p366
        $region62: #{tpu_custom_call.1} parent=47 // pred_check_branch
          %369 = sbr.rel (%p367) target = $region64
        $region63: #{tpu_custom_call.1} parent=47 // pred_region
          %v370 = vld [vmem:[%s320] sm:$0xff]
          %v371 = vld [vmem:[%s1] sm:$0x1]
          %v372 = vld [vmem:[%s2] sm:$0x1]
          %vm373 = vcmask 261120
          %v374 = vsel %vm373, %v370, 0.0
          %375 = vadd.xlane.f32.xlu0 %v374
          %v376 = vpop.xlane.xlu0 %375
          %v377 = vrcp.pop 32.0
          %v378 = vmul.f32 %v376, %v377
          %v379 = vsub.f32 %v370, %v378
          %v380 = vmul.f32 %v379, %v379
          %v381 = vsel %vm373, %v380, 0.0
          %382 = vadd.xlane.f32.xlu0 %v381
          %v383 = vpop.xlane.xlu0 %382
          %v384 = vmul.f32 %v383, %v377
          %v385 = vadd.f32 %v384, 1e-05
          %v386 = vrsqrt.pop %v385
          %v387 = vmul.f32 %v379, %v386
          %v389 = vlaneseq
          %v390 = vshrl.u32 %v389, 7
          %v391 = vsub.s32 0, %v390
          %v392 = vrot.slane %v371, %v391
          %v394 = vmul.f32 %v387, %v392
          %v396 = vlaneseq
          %v397 = vshrl.u32 %v396, 7
          %v398 = vsub.s32 0, %v397
          %v399 = vrot.slane %v372, %v398
          %v401 = vadd.f32 %v394, %v399
          %v402 = vpack.c.bf16 %v401, %v401
          %vm403 = vcmask 257024
          %404 = vst.msk [vmem:[#allocation2] sm:$0xf] %vm403, %v402
          %v405 = vld [vmem:[%s6] sm:$0x1]
          %v407 = vlaneseq
          %v408 = vshrl.u32 %v407, 7
          %v409 = vsub.s32 0, %v408
          %v410 = vrot.slane %v405, %v409
          %v412 = vadd.f32 %v370, %v410
          %413 = vst.msk [vmem:[%s361] sm:$0xff] %vm373, %v412
        $region64: #{tpu_custom_call.1} parent=47 // pred_fallthru
          _
        %v414 = vld [vmem:[#allocation2] sm:$0xf]
        %v415 = vld [vmem:[#allocation6] sm:$0xf]
        %v416 = vld [vmem:[#allocation6 + $0x4] sm:$0xf]
        %v417 = vld [vmem:[#allocation6 + $0x8] sm:$0xf]
        %v418 = vld [vmem:[#allocation6 + $0xc] sm:$0xf]
        %v419 = vld [vmem:[%s364] sm:$0x1]
        %v421 = vlaneseq
        %v422 = vshrl.u32 %v421, 7
        %v423 = vsub.s32 0, %v422
        %v424 = vrot.slane %v419, %v423
        %v430 = vunpack.c.l.b16 %v415
        %v431 = vunpack.c.l.b16 %v416
        %v432 = vunpack.c.l.b16 %v417
        %v433 = vunpack.c.l.b16 %v418
        %v434 = vpack.c.b16 %v431, %v430
        %v435 = vpack.c.b16 %v433, %v432
        %vm438 = vcmask 261120
        %v440 = vsel %vm438, %v414, 0
        %442 = vmatprep.subr.bf16.mxu0 0
        %443 = vmatpush1.bf16.msra.mxu0 0
        %444 = vmatprep.subr.bf16.mxu0 0
        %445 = vmatpush1.bf16.msra.mxu0 0
        %446 = vmatprep.subr.bf16.mxu0 0
        %447 = vmatpush1.bf16.msra.mxu0 0
        %448 = vmatprep.subr.bf16.mxu0 0
        %449 = vmatpush1.bf16.msra.mxu0 0
        %450 = vmatprep.subr.bf16.mxu0 0
        %451 = vmatpush1.bf16.msra.mxu0 0
        %452 = vmatprep.subr.bf16.mxu0 0
        %453 = vmatpush1.bf16.msra.mxu0 0
        %454 = vmatprep.subr.bf16.mxu0 0
        %455 = vmatpush1.bf16.msra.mxu0 %v435
        %456 = vmatprep.subr.bf16.mxu0 0
        %457 = vmatpush1.bf16.msra.mxu0 %v434
        %458 = vmatprep.subr.bf16.mxu0 0
        %459 = vmatpush2.bf16.msra.mxu0 0
        %460 = vmatprep.subr.bf16.mxu0 0
        %461 = vmatpush2.bf16.msra.mxu0 0
        %462 = vmatprep.subr.bf16.mxu0 0
        %463 = vmatpush2.bf16.msra.mxu0 0
        %464 = vmatprep.subr.bf16.mxu0 0
        %465 = vmatpush2.bf16.msra.mxu0 0
        %466 = vmatprep.subr.bf16.mxu0 0
        %467 = vmatpush2.bf16.msra.mxu0 0
        %468 = vmatprep.subr.bf16.mxu0 0
        %469 = vmatpush2.bf16.msra.mxu0 0
        %470 = vmatprep.subr.bf16.mxu0 0
        %471 = vmatpush2.bf16.msra.mxu0 0
        %472 = vmatprep.subr.bf16.mxu0 0
        %473 = vmatpush2.bf16.msra.mxu0 0
        %474 = vmatprep.mubr.bf16.mxu0 0
        %475 = vmatmul.mubr.bf16.gmra.mxu0 %v440
        %v476 = vpop.f32.mrf.mxu0
        %v477 = vadd.f32 %v424, %v476
        %v478 = vpop.f32.mrf.mxu0
        %v479 = vpop.f32.mrf.mxu0
        %v480 = vpop.f32.mrf.mxu0
        %481 = vdwg.mxu0
        %v482 = vpack.c.bf16 %v477, %v477
        %v483 = vlaneseq
        %v484 = vshrl.u32 %v483, 7
        %486 = vrot.lane.b32.xlu0 %v482, 96
        %v487 = vpop.permute.xlu0 %486
        %vm488 = vcmask 64512
        %v490 = vsel %vm488, %v482, 0
        %v493 = vsel %vm488, %v487, 0
        %495 = vmatprep.subr.bf16.mxu0 0
        %496 = vmatpush1.bf16.xpose.msra.mxu0 0
        %497 = vmatprep.subr.bf16.mxu0 0
        %498 = vmatpush1.bf16.xpose.msra.mxu0 0
        %499 = vmatprep.subr.bf16.mxu0 0
        %500 = vmatpush1.bf16.xpose.msra.mxu0 0
        %501 = vmatprep.subr.bf16.mxu0 0
        %502 = vmatpush1.bf16.xpose.msra.mxu0 0
        %503 = vmatprep.subr.bf16.mxu0 0
        %504 = vmatpush1.bf16.xpose.msra.mxu0 0
        %505 = vmatprep.subr.bf16.mxu0 0
        %506 = vmatpush1.bf16.xpose.msra.mxu0 0
        %507 = vmatprep.subr.bf16.mxu0 0
        %508 = vmatpush1.bf16.xpose.msra.mxu0 0
        %509 = vmatprep.subr.bf16.mxu0 0
        %510 = vmatpush1.bf16.xpose.msra.mxu0 %v493
        %511 = vmatprep.subr.bf16.mxu0 0
        %512 = vmatpush2.bf16.xpose.msra.mxu0 0
        %513 = vmatprep.subr.bf16.mxu0 0
        %514 = vmatpush2.bf16.xpose.msra.mxu0 0
        %515 = vmatprep.subr.bf16.mxu0 0
        %516 = vmatpush2.bf16.xpose.msra.mxu0 0
        %517 = vmatprep.subr.bf16.mxu0 0
        %518 = vmatpush2.bf16.xpose.msra.mxu0 0
        %519 = vmatprep.subr.bf16.mxu0 0
        %520 = vmatpush2.bf16.xpose.msra.mxu0 0
        %521 = vmatprep.subr.bf16.mxu0 0
        %522 = vmatpush2.bf16.xpose.msra.mxu0 0
        %523 = vmatprep.subr.bf16.mxu0 0
        %524 = vmatpush2.bf16.xpose.msra.mxu0 0
        %525 = vmatprep.subr.bf16.mxu0 0
        %526 = vmatpush2.bf16.xpose.msra.mxu0 0
        %527 = vmatprep.mubr.bf16.mxu0 0
        %528 = vmatmul.mubr.bf16.gmra.mxu0 %v490
        %v529 = vpop.f32.mrf.mxu0
        %v530 = vadd.f32 0.0, %v529
        %v531 = vpop.f32.mrf.mxu0
        %v532 = vpop.f32.mrf.mxu0
        %v533 = vpop.f32.mrf.mxu0
        %534 = vdwg.mxu0
        %v535 = vlaneseq
        %v536 = vand.u32 %v535, 127
        %vm537 = vcmp.ge.s32.totalorder %v484, %v536
        %v538 = vsel %vm537, %v530, -1e+30
        %v539 = vsel %vm488, %v538, -inf
        %540 = vmax.xlane.f32.xlu0 %v539
        %v541 = vpop.xlane.xlu0 %540
        %v542 = vmax.f32 %v541, -1e+30
        %v543 = vsub.f32 -1e+30, %v542
        %v544 = vmul.f32 %v543, 1.442695
        %v545 = vpow.pop %v544
        %v546 = vsub.f32 %v538, %v542
        %v547 = vmul.f32 %v546, 1.442695
        %v548 = vpow.pop %v547
        %v549 = vmul.f32 %v545, 0.0
        %v550 = vsel %vm488, %v548, 0.0
        %551 = vadd.xlane.f32.xlu0 %v550
        %v552 = vpop.xlane.xlu0 %551
        %v553 = vadd.f32 %v549, %v552
        %v554 = vpack.c.bf16 %v548, %v548
        %555 = vrot.lane.b32.xlu0 %v482, 64
        %v556 = vpop.permute.xlu0 %555
        %v558 = vsel %vm488, %v554, 0
        %vm560 = vcmask 1043456
        %v562 = vsel %vm560, %v556, 0
        %564 = vmatprep.subr.bf16.mxu0 0
        %565 = vmatpush1.bf16.msra.mxu0 0
        %566 = vmatprep.subr.bf16.mxu0 0
        %567 = vmatpush1.bf16.msra.mxu0 0
        %568 = vmatprep.subr.bf16.mxu0 0
        %569 = vmatpush1.bf16.msra.mxu0 0
        %570 = vmatprep.subr.bf16.mxu0 0
        %571 = vmatpush1.bf16.msra.mxu0 0
        %572 = vmatprep.subr.bf16.mxu0 0
        %573 = vmatpush1.bf16.msra.mxu0 0
        %574 = vmatprep.subr.bf16.mxu0 0
        %575 = vmatpush1.bf16.msra.mxu0 0
        %576 = vmatprep.subr.bf16.mxu0 0
        %577 = vmatpush1.bf16.msra.mxu0 0
        %578 = vmatprep.subr.bf16.mxu0 0
        %579 = vmatpush1.bf16.msra.mxu0 %v562
        %580 = vmatprep.subr.bf16.mxu0 0
        %581 = vmatpush2.bf16.msra.mxu0 0
        %582 = vmatprep.subr.bf16.mxu0 0
        %583 = vmatpush2.bf16.msra.mxu0 0
        %584 = vmatprep.subr.bf16.mxu0 0
        %585 = vmatpush2.bf16.msra.mxu0 0
        %586 = vmatprep.subr.bf16.mxu0 0
        %587 = vmatpush2.bf16.msra.mxu0 0
        %588 = vmatprep.subr.bf16.mxu0 0
        %589 = vmatpush2.bf16.msra.mxu0 0
        %590 = vmatprep.subr.bf16.mxu0 0
        %591 = vmatpush2.bf16.msra.mxu0 0
        %592 = vmatprep.subr.bf16.mxu0 0
        %593 = vmatpush2.bf16.msra.mxu0 0
        %594 = vmatprep.subr.bf16.mxu0 0
        %595 = vmatpush2.bf16.msra.mxu0 0
        %596 = vmatprep.mubr.bf16.mxu0 0
        %597 = vmatmul.mubr.bf16.gmra.mxu0 %v558
        %v598 = vpop.f32.mrf.mxu0
        %v599 = vadd.f32 0.0, %v598
        %v600 = vpop.f32.mrf.mxu0
        %v601 = vpop.f32.mrf.mxu0
        %v602 = vpop.f32.mrf.mxu0
        %603 = vdwg.mxu0
        %v604 = vadd.f32 %v549, %v599
        %v605 = vrcp.pop %v553
        %v606 = vmul.f32 %v604, %v605
        %v607 = vpack.c.bf16 %v606, %v606
        %608 = vrot.lane.b32.xlu0 %v482, 120
        %v609 = vpop.permute.xlu0 %608
        %610 = vrot.lane.b32.xlu0 %v482, 88
        %v611 = vpop.permute.xlu0 %610
        %v613 = vsel %vm488, %v609, 0
        %v616 = vsel %vm488, %v611, 0
        %618 = vmatprep.subr.bf16.mxu0 0
        %619 = vmatpush1.bf16.xpose.msra.mxu0 0
        %620 = vmatprep.subr.bf16.mxu0 0
        %621 = vmatpush1.bf16.xpose.msra.mxu0 0
        %622 = vmatprep.subr.bf16.mxu0 0
        %623 = vmatpush1.bf16.xpose.msra.mxu0 0
        %624 = vmatprep.subr.bf16.mxu0 0
        %625 = vmatpush1.bf16.xpose.msra.mxu0 0
        %626 = vmatprep.subr.bf16.mxu0 0
        %627 = vmatpush1.bf16.xpose.msra.mxu0 0
        %628 = vmatprep.subr.bf16.mxu0 0
        %629 = vmatpush1.bf16.xpose.msra.mxu0 0
        %630 = vmatprep.subr.bf16.mxu0 0
        %631 = vmatpush1.bf16.xpose.msra.mxu0 0
        %632 = vmatprep.subr.bf16.mxu0 0
        %633 = vmatpush1.bf16.xpose.msra.mxu0 %v616
        %634 = vmatprep.subr.bf16.mxu0 0
        %635 = vmatpush2.bf16.xpose.msra.mxu0 0
        %636 = vmatprep.subr.bf16.mxu0 0
        %637 = vmatpush2.bf16.xpose.msra.mxu0 0
        %638 = vmatprep.subr.bf16.mxu0 0
        %639 = vmatpush2.bf16.xpose.msra.mxu0 0
        %640 = vmatprep.subr.bf16.mxu0 0
        %641 = vmatpush2.bf16.xpose.msra.mxu0 0
        %642 = vmatprep.subr.bf16.mxu0 0
        %643 = vmatpush2.bf16.xpose.msra.mxu0 0
        %644 = vmatprep.subr.bf16.mxu0 0
        %645 = vmatpush2.bf16.xpose.msra.mxu0 0
        %646 = vmatprep.subr.bf16.mxu0 0
        %647 = vmatpush2.bf16.xpose.msra.mxu0 0
        %648 = vmatprep.subr.bf16.mxu0 0
        %649 = vmatpush2.bf16.xpose.msra.mxu0 0
        %650 = vmatprep.mubr.bf16.mxu0 0
        %651 = vmatmul.mubr.bf16.gmra.mxu0 %v613
        %v652 = vpop.f32.mrf.mxu0
        %v653 = vadd.f32 0.0, %v652
        %v654 = vpop.f32.mrf.mxu0
        %v655 = vpop.f32.mrf.mxu0
        %v656 = vpop.f32.mrf.mxu0
        %657 = vdwg.mxu0
        %v658 = vsel %vm537, %v653, -1e+30
        %v659 = vsel %vm488, %v658, -inf
        %660 = vmax.xlane.f32.xlu0 %v659
        %v661 = vpop.xlane.xlu0 %660
        %v662 = vmax.f32 %v661, -1e+30
        %v663 = vsub.f32 -1e+30, %v662
        %v664 = vmul.f32 %v663, 1.442695
        %v665 = vpow.pop %v664
        %v666 = vsub.f32 %v658, %v662
        %v667 = vmul.f32 %v666, 1.442695
        %v668 = vpow.pop %v667
        %v669 = vmul.f32 %v665, 0.0
        %v670 = vsel %vm488, %v668, 0.0
        %671 = vadd.xlane.f32.xlu0 %v670
        %v672 = vpop.xlane.xlu0 %671
        %v673 = vadd.f32 %v669, %v672
        %v674 = vpack.c.bf16 %v668, %v668
        %675 = vrot.lane.b32.xlu0 %v482, 56
        %v676 = vpop.permute.xlu0 %675
        %v678 = vsel %vm488, %v674, 0
        %v681 = vsel %vm560, %v676, 0
        %683 = vmatprep.subr.bf16.mxu0 0
        %684 = vmatpush1.bf16.msra.mxu0 0
        %685 = vmatprep.subr.bf16.mxu0 0
        %686 = vmatpush1.bf16.msra.mxu0 0
        %687 = vmatprep.subr.bf16.mxu0 0
        %688 = vmatpush1.bf16.msra.mxu0 0
        %689 = vmatprep.subr.bf16.mxu0 0
        %690 = vmatpush1.bf16.msra.mxu0 0
        %691 = vmatprep.subr.bf16.mxu0 0
        %692 = vmatpush1.bf16.msra.mxu0 0
        %693 = vmatprep.subr.bf16.mxu0 0
        %694 = vmatpush1.bf16.msra.mxu0 0
        %695 = vmatprep.subr.bf16.mxu0 0
        %696 = vmatpush1.bf16.msra.mxu0 0
        %697 = vmatprep.subr.bf16.mxu0 0
        %698 = vmatpush1.bf16.msra.mxu0 %v681
        %699 = vmatprep.subr.bf16.mxu0 0
        %700 = vmatpush2.bf16.msra.mxu0 0
        %701 = vmatprep.subr.bf16.mxu0 0
        %702 = vmatpush2.bf16.msra.mxu0 0
        %703 = vmatprep.subr.bf16.mxu0 0
        %704 = vmatpush2.bf16.msra.mxu0 0
        %705 = vmatprep.subr.bf16.mxu0 0
        %706 = vmatpush2.bf16.msra.mxu0 0
        %707 = vmatprep.subr.bf16.mxu0 0
        %708 = vmatpush2.bf16.msra.mxu0 0
        %709 = vmatprep.subr.bf16.mxu0 0
        %710 = vmatpush2.bf16.msra.mxu0 0
        %711 = vmatprep.subr.bf16.mxu0 0
        %712 = vmatpush2.bf16.msra.mxu0 0
        %713 = vmatprep.subr.bf16.mxu0 0
        %714 = vmatpush2.bf16.msra.mxu0 0
        %715 = vmatprep.mubr.bf16.mxu0 0
        %716 = vmatmul.mubr.bf16.gmra.mxu0 %v678
        %v717 = vpop.f32.mrf.mxu0
        %v718 = vadd.f32 0.0, %v717
        %v719 = vpop.f32.mrf.mxu0
        %v720 = vpop.f32.mrf.mxu0
        %v721 = vpop.f32.mrf.mxu0
        %722 = vdwg.mxu0
        %v723 = vadd.f32 %v669, %v718
        %v724 = vrcp.pop %v673
        %v725 = vmul.f32 %v723, %v724
        %v726 = vpack.c.bf16 %v725, %v725
        %727 = vrot.lane.b32.xlu0 %v482, 112
        %v728 = vpop.permute.xlu0 %727
        %729 = vrot.lane.b32.xlu0 %v482, 80
        %v730 = vpop.permute.xlu0 %729
        %v732 = vsel %vm488, %v728, 0
        %v735 = vsel %vm488, %v730, 0
        %737 = vmatprep.subr.bf16.mxu0 0
        %738 = vmatpush1.bf16.xpose.msra.mxu0 0
        %739 = vmatprep.subr.bf16.mxu0 0
        %740 = vmatpush1.bf16.xpose.msra.mxu0 0
        %741 = vmatprep.subr.bf16.mxu0 0
        %742 = vmatpush1.bf16.xpose.msra.mxu0 0
        %743 = vmatprep.subr.bf16.mxu0 0
        %744 = vmatpush1.bf16.xpose.msra.mxu0 0
        %745 = vmatprep.subr.bf16.mxu0 0
        %746 = vmatpush1.bf16.xpose.msra.mxu0 0
        %747 = vmatprep.subr.bf16.mxu0 0
        %748 = vmatpush1.bf16.xpose.msra.mxu0 0
        %749 = vmatprep.subr.bf16.mxu0 0
        %750 = vmatpush1.bf16.xpose.msra.mxu0 0
        %751 = vmatprep.subr.bf16.mxu0 0
        %752 = vmatpush1.bf16.xpose.msra.mxu0 %v735
        %753 = vmatprep.subr.bf16.mxu0 0
        %754 = vmatpush2.bf16.xpose.msra.mxu0 0
        %755 = vmatprep.subr.bf16.mxu0 0
        %756 = vmatpush2.bf16.xpose.msra.mxu0 0
        %757 = vmatprep.subr.bf16.mxu0 0
        %758 = vmatpush2.bf16.xpose.msra.mxu0 0
        %759 = vmatprep.subr.bf16.mxu0 0
        %760 = vmatpush2.bf16.xpose.msra.mxu0 0
        %761 = vmatprep.subr.bf16.mxu0 0
        %762 = vmatpush2.bf16.xpose.msra.mxu0 0
        %763 = vmatprep.subr.bf16.mxu0 0
        %764 = vmatpush2.bf16.xpose.msra.mxu0 0
        %765 = vmatprep.subr.bf16.mxu0 0
        %766 = vmatpush2.bf16.xpose.msra.mxu0 0
        %767 = vmatprep.subr.bf16.mxu0 0
        %768 = vmatpush2.bf16.xpose.msra.mxu0 0
        %769 = vmatprep.mubr.bf16.mxu0 0
        %770 = vmatmul.mubr.bf16.gmra.mxu0 %v732
        %v771 = vpop.f32.mrf.mxu0
        %v772 = vadd.f32 0.0, %v771
        %v773 = vpop.f32.mrf.mxu0
        %v774 = vpop.f32.mrf.mxu0
        %v775 = vpop.f32.mrf.mxu0
        %776 = vdwg.mxu0
        %v777 = vsel %vm537, %v772, -1e+30
        %v778 = vsel %vm488, %v777, -inf
        %779 = vmax.xlane.f32.xlu0 %v778
        %v780 = vpop.xlane.xlu0 %779
        %v781 = vmax.f32 %v780, -1e+30
        %v782 = vsub.f32 -1e+30, %v781
        %v783 = vmul.f32 %v782, 1.442695
        %v784 = vpow.pop %v783
        %v785 = vsub.f32 %v777, %v781
        %v786 = vmul.f32 %v785, 1.442695
        %v787 = vpow.pop %v786
        %v788 = vmul.f32 %v784, 0.0
        %v789 = vsel %vm488, %v787, 0.0
        %790 = vadd.xlane.f32.xlu0 %v789
        %v791 = vpop.xlane.xlu0 %790
        %v792 = vadd.f32 %v788, %v791
        %v793 = vpack.c.bf16 %v787, %v787
        %794 = vrot.lane.b32.xlu0 %v482, 48
        %v795 = vpop.permute.xlu0 %794
        %v797 = vsel %vm488, %v793, 0
        %v800 = vsel %vm560, %v795, 0
        %802 = vmatprep.subr.bf16.mxu0 0
        %803 = vmatpush1.bf16.msra.mxu0 0
        %804 = vmatprep.subr.bf16.mxu0 0
        %805 = vmatpush1.bf16.msra.mxu0 0
        %806 = vmatprep.subr.bf16.mxu0 0
        %807 = vmatpush1.bf16.msra.mxu0 0
        %808 = vmatprep.subr.bf16.mxu0 0
        %809 = vmatpush1.bf16.msra.mxu0 0
        %810 = vmatprep.subr.bf16.mxu0 0
        %811 = vmatpush1.bf16.msra.mxu0 0
        %812 = vmatprep.subr.bf16.mxu0 0
        %813 = vmatpush1.bf16.msra.mxu0 0
        %814 = vmatprep.subr.bf16.mxu0 0
        %815 = vmatpush1.bf16.msra.mxu0 0
        %816 = vmatprep.subr.bf16.mxu0 0
        %817 = vmatpush1.bf16.msra.mxu0 %v800
        %818 = vmatprep.subr.bf16.mxu0 0
        %819 = vmatpush2.bf16.msra.mxu0 0
        %820 = vmatprep.subr.bf16.mxu0 0
        %821 = vmatpush2.bf16.msra.mxu0 0
        %822 = vmatprep.subr.bf16.mxu0 0
        %823 = vmatpush2.bf16.msra.mxu0 0
        %824 = vmatprep.subr.bf16.mxu0 0
        %825 = vmatpush2.bf16.msra.mxu0 0
        %826 = vmatprep.subr.bf16.mxu0 0
        %827 = vmatpush2.bf16.msra.mxu0 0
        %828 = vmatprep.subr.bf16.mxu0 0
        %829 = vmatpush2.bf16.msra.mxu0 0
        %830 = vmatprep.subr.bf16.mxu0 0
        %831 = vmatpush2.bf16.msra.mxu0 0
        %832 = vmatprep.subr.bf16.mxu0 0
        %833 = vmatpush2.bf16.msra.mxu0 0
        %834 = vmatprep.mubr.bf16.mxu0 0
        %835 = vmatmul.mubr.bf16.gmra.mxu0 %v797
        %v836 = vpop.f32.mrf.mxu0
        %v837 = vadd.f32 0.0, %v836
        %v838 = vpop.f32.mrf.mxu0
        %v839 = vpop.f32.mrf.mxu0
        %v840 = vpop.f32.mrf.mxu0
        %841 = vdwg.mxu0
        %v842 = vadd.f32 %v788, %v837
        %v843 = vrcp.pop %v792
        %v844 = vmul.f32 %v842, %v843
        %v845 = vpack.c.bf16 %v844, %v844
        %846 = vrot.lane.b32.xlu0 %v482, 104
        %v847 = vpop.permute.xlu0 %846
        %848 = vrot.lane.b32.xlu0 %v482, 72
        %v849 = vpop.permute.xlu0 %848
        %v851 = vsel %vm488, %v847, 0
        %v854 = vsel %vm488, %v849, 0
        %856 = vmatprep.subr.bf16.mxu0 0
        %857 = vmatpush1.bf16.xpose.msra.mxu0 0
        %858 = vmatprep.subr.bf16.mxu0 0
        %859 = vmatpush1.bf16.xpose.msra.mxu0 0
        %860 = vmatprep.subr.bf16.mxu0 0
        %861 = vmatpush1.bf16.xpose.msra.mxu0 0
        %862 = vmatprep.subr.bf16.mxu0 0
        %863 = vmatpush1.bf16.xpose.msra.mxu0 0
        %864 = vmatprep.subr.bf16.mxu0 0
        %865 = vmatpush1.bf16.xpose.msra.mxu0 0
        %866 = vmatprep.subr.bf16.mxu0 0
        %867 = vmatpush1.bf16.xpose.msra.mxu0 0
        %868 = vmatprep.subr.bf16.mxu0 0
        %869 = vmatpush1.bf16.xpose.msra.mxu0 0
        %870 = vmatprep.subr.bf16.mxu0 0
        %871 = vmatpush1.bf16.xpose.msra.mxu0 %v854
        %872 = vmatprep.subr.bf16.mxu0 0
        %873 = vmatpush2.bf16.xpose.msra.mxu0 0
        %874 = vmatprep.subr.bf16.mxu0 0
        %875 = vmatpush2.bf16.xpose.msra.mxu0 0
        %876 = vmatprep.subr.bf16.mxu0 0
        %877 = vmatpush2.bf16.xpose.msra.mxu0 0
        %878 = vmatprep.subr.bf16.mxu0 0
        %879 = vmatpush2.bf16.xpose.msra.mxu0 0
        %880 = vmatprep.subr.bf16.mxu0 0
        %881 = vmatpush2.bf16.xpose.msra.mxu0 0
        %882 = vmatprep.subr.bf16.mxu0 0
        %883 = vmatpush2.bf16.xpose.msra.mxu0 0
        %884 = vmatprep.subr.bf16.mxu0 0
        %885 = vmatpush2.bf16.xpose.msra.mxu0 0
        %886 = vmatprep.subr.bf16.mxu0 0
        %887 = vmatpush2.bf16.xpose.msra.mxu0 0
        %888 = vmatprep.mubr.bf16.mxu0 0
        %889 = vmatmul.mubr.bf16.gmra.mxu0 %v851
        %v890 = vpop.f32.mrf.mxu0
        %v891 = vadd.f32 0.0, %v890
        %v892 = vpop.f32.mrf.mxu0
        %v893 = vpop.f32.mrf.mxu0
        %v894 = vpop.f32.mrf.mxu0
        %895 = vdwg.mxu0
        %v896 = vsel %vm537, %v891, -1e+30
        %v897 = vsel %vm488, %v896, -inf
        %898 = vmax.xlane.f32.xlu0 %v897
        %v899 = vpop.xlane.xlu0 %898
        %v900 = vmax.f32 %v899, -1e+30
        %v901 = vsub.f32 -1e+30, %v900
        %v902 = vmul.f32 %v901, 1.442695
        %v903 = vpow.pop %v902
        %v904 = vsub.f32 %v896, %v900
        %v905 = vmul.f32 %v904, 1.442695
        %v906 = vpow.pop %v905
        %v907 = vmul.f32 %v903, 0.0
        %v908 = vsel %vm488, %v906, 0.0
        %909 = vadd.xlane.f32.xlu0 %v908
        %v910 = vpop.xlane.xlu0 %909
        %v911 = vadd.f32 %v907, %v910
        %v912 = vpack.c.bf16 %v906, %v906
        %913 = vrot.lane.b32.xlu0 %v482, 40
        %v914 = vpop.permute.xlu0 %913
        %v916 = vsel %vm488, %v912, 0
        %v919 = vsel %vm560, %v914, 0
        %921 = vmatprep.subr.bf16.mxu0 0
        %922 = vmatpush1.bf16.msra.mxu0 0
        %923 = vmatprep.subr.bf16.mxu0 0
        %924 = vmatpush1.bf16.msra.mxu0 0
        %925 = vmatprep.subr.bf16.mxu0 0
        %926 = vmatpush1.bf16.msra.mxu0 0
        %927 = vmatprep.subr.bf16.mxu0 0
        %928 = vmatpush1.bf16.msra.mxu0 0
        %929 = vmatprep.subr.bf16.mxu0 0
        %930 = vmatpush1.bf16.msra.mxu0 0
        %931 = vmatprep.subr.bf16.mxu0 0
        %932 = vmatpush1.bf16.msra.mxu0 0
        %933 = vmatprep.subr.bf16.mxu0 0
        %934 = vmatpush1.bf16.msra.mxu0 0
        %935 = vmatprep.subr.bf16.mxu0 0
        %936 = vmatpush1.bf16.msra.mxu0 %v919
        %937 = vmatprep.subr.bf16.mxu0 0
        %938 = vmatpush2.bf16.msra.mxu0 0
        %939 = vmatprep.subr.bf16.mxu0 0
        %940 = vmatpush2.bf16.msra.mxu0 0
        %941 = vmatprep.subr.bf16.mxu0 0
        %942 = vmatpush2.bf16.msra.mxu0 0
        %943 = vmatprep.subr.bf16.mxu0 0
        %944 = vmatpush2.bf16.msra.mxu0 0
        %945 = vmatprep.subr.bf16.mxu0 0
        %946 = vmatpush2.bf16.msra.mxu0 0
        %947 = vmatprep.subr.bf16.mxu0 0
        %948 = vmatpush2.bf16.msra.mxu0 0
        %949 = vmatprep.subr.bf16.mxu0 0
        %950 = vmatpush2.bf16.msra.mxu0 0
        %951 = vmatprep.subr.bf16.mxu0 0
        %952 = vmatpush2.bf16.msra.mxu0 0
        %953 = vmatprep.mubr.bf16.mxu0 0
        %954 = vmatmul.mubr.bf16.gmra.mxu0 %v916
        %v955 = vpop.f32.mrf.mxu0
        %v956 = vadd.f32 0.0, %v955
        %v957 = vpop.f32.mrf.mxu0
        %v958 = vpop.f32.mrf.mxu0
        %v959 = vpop.f32.mrf.mxu0
        %960 = vdwg.mxu0
        %v961 = vadd.f32 %v907, %v956
        %v962 = vrcp.pop %v911
        %v963 = vmul.f32 %v961, %v962
        %v964 = vpack.c.bf16 %v963, %v963
        %966 = vrot.lane.b32.xlu0 %v726, 8
        %v967 = vpop.permute.xlu0 %966
        %969 = vrot.lane.b32.xlu0 %v845, 16
        %v970 = vpop.permute.xlu0 %969
        %972 = vrot.lane.b32.xlu0 %v964, 24
        %v973 = vpop.permute.xlu0 %972
        %v976 = vsel %vm488, %v607, %v967
        %vm977 = vcmask 130048
        %v979 = vsel %vm977, %v976, %v970
        %vm980 = vcmask 195584
        %v982 = vsel %vm980, %v979, %v973
        %v983 = vld [vmem:[%s361] sm:$0xff]
        %v984 = vld [vmem:[#allocation8] sm:$0xf]
        %v985 = vld [vmem:[#allocation8 + $0x4] sm:$0xf]
        %v986 = vld [vmem:[#allocation8 + $0x8] sm:$0xf]
        %v987 = vld [vmem:[#allocation8 + $0xc] sm:$0xf]
        %v992 = vunpack.c.l.b16 %v984
        %v993 = vunpack.c.l.b16 %v985
        %v994 = vunpack.c.l.b16 %v986
        %v995 = vunpack.c.l.b16 %v987
        %v996 = vpack.c.b16 %v993, %v992
        %v997 = vpack.c.b16 %v995, %v994
        %v1000 = vsel %vm438, %v982, 0
        %1002 = vmatprep.subr.bf16.mxu0 0
        %1003 = vmatpush1.bf16.msra.mxu0 0
        %1004 = vmatprep.subr.bf16.mxu0 0
        %1005 = vmatpush1.bf16.msra.mxu0 0
        %1006 = vmatprep.subr.bf16.mxu0 0
        %1007 = vmatpush1.bf16.msra.mxu0 0
        %1008 = vmatprep.subr.bf16.mxu0 0
        %1009 = vmatpush1.bf16.msra.mxu0 0
        %1010 = vmatprep.subr.bf16.mxu0 0
        %1011 = vmatpush1.bf16.msra.mxu0 0
        %1012 = vmatprep.subr.bf16.mxu0 0
        %1013 = vmatpush1.bf16.msra.mxu0 0
        %1014 = vmatprep.subr.bf16.mxu0 0
        %1015 = vmatpush1.bf16.msra.mxu0 %v997
        %1016 = vmatprep.subr.bf16.mxu0 0
        %1017 = vmatpush1.bf16.msra.mxu0 %v996
        %1018 = vmatprep.subr.bf16.mxu0 0
        %1019 = vmatpush2.bf16.msra.mxu0 0
        %1020 = vmatprep.subr.bf16.mxu0 0
        %1021 = vmatpush2.bf16.msra.mxu0 0
        %1022 = vmatprep.subr.bf16.mxu0 0
        %1023 = vmatpush2.bf16.msra.mxu0 0
        %1024 = vmatprep.subr.bf16.mxu0 0
        %1025 = vmatpush2.bf16.msra.mxu0 0
        %1026 = vmatprep.subr.bf16.mxu0 0
        %1027 = vmatpush2.bf16.msra.mxu0 0
        %1028 = vmatprep.subr.bf16.mxu0 0
        %1029 = vmatpush2.bf16.msra.mxu0 0
        %1030 = vmatprep.subr.bf16.mxu0 0
        %1031 = vmatpush2.bf16.msra.mxu0 0
        %1032 = vmatprep.subr.bf16.mxu0 0
        %1033 = vmatpush2.bf16.msra.mxu0 0
        %1034 = vmatprep.mubr.bf16.mxu0 0
        %1035 = vmatmul.mubr.bf16.gmra.mxu0 %v1000
        %v1036 = vpop.f32.mrf.mxu0
        %v1037 = vadd.f32 0.0, %v1036
        %v1038 = vpop.f32.mrf.mxu0
        %v1039 = vpop.f32.mrf.mxu0
        %v1040 = vpop.f32.mrf.mxu0
        %1041 = vdwg.mxu0
        %v1042 = vadd.f32 %v983, %v1037
        %1043 = vst.msk [vmem:[%s361] sm:$0xff] %vm438, %v1042
        %s1044 = sand.u32 %s212, 1
        %s1045 = scalar_lea.sflag [#allocation5], %s1044
        %s1046 = sand.u32 %s212, 1
        %s1047 = smul.addr %s1046, 8
        %s1048 = scalar_lea.vmem [#allocation9], %s1047
        // Predicated region
        $region65: #{tpu_custom_call.1} parent=47 // pred_check
          %p1049 = pneg %p222
        $region66: #{tpu_custom_call.1} parent=47 // pred_check_branch
          %1051 = sbr.rel (%p1049) target = $region68
        $region67: #{tpu_custom_call.1} parent=47 // pred_region
          %s1053 = ssub.s32 128, 128
          %1054 = vsyncadd %s1045, %s1053
          %s1055 = smul.addr %s29, 128
          %s1056 = scalar_lea.hbm %s7, %s1055
          %s1058 = sshll.u32 %s1048, 4
          %s1059 = int_to_ptr.vmem [resolvable:$true] %s1058
          %1061 = dma.vmem_to_hbm [thread:$0]  %s1059, 128, %s1056, %s1045
        $region68: #{tpu_custom_call.1} parent=47 // pred_fallthru
          _
      $region48: #{tpu_custom_call.1} parent=5 // pred_fallthru
        _
      %p1062 = scmp.le.s32.totalorder 2, %s20
      // Predicated region
      $region69: #{tpu_custom_call.1} parent=5 // pred_check
        %p1063 = pneg %p1062
      $region70: #{tpu_custom_call.1} parent=5 // pred_check_branch
        %1065 = sbr.rel (%p1063) target = $region72
      $region71: #{tpu_custom_call.1} parent=5 // pred_region
        %s1066 = ssub.s32 %s20, 2
        // Predicated region
        $region73: #{tpu_custom_call.1} parent=71 // pred_check
          %p1067 = pneg %p228
        $region74: #{tpu_custom_call.1} parent=71 // pred_check_branch
          %1069 = sbr.rel (%p1067) target = $region76
        $region75: #{tpu_custom_call.1} parent=71 // pred_region
          %s1070 = sand.u32 %s213, 1
          %s1071 = scalar_lea.sflag [#allocation5], %s1070
          %s1072 = sand.u32 %s213, 1
          %s1073 = smul.addr %s1072, 8
          %s1074 = scalar_lea.vmem [#allocation9], %s1073
          %1075 = dma.done %s1071, 128
        $region76: #{tpu_custom_call.1} parent=71 // pred_fallthru
          _
      $region72: #{tpu_custom_call.1} parent=5 // pred_fallthru
        _
    $region6: #{tpu_custom_call.1} parent=1 // loop_footer
      %s24 = sadd.s32 1, %s20
    $region7: #{tpu_custom_call.1} parent=1 // loop_footer_branch
      %19 = sbr.rel target = $region3
    $region8: #{tpu_custom_call.1} parent=1 // loop_exit
      _
    %1076 = vsyncpa [#allocation4], 1
    %s1077 = scalar_lea.sflag [#allocation4], 1
    %1078 = vsyncpa %s1077, 1
    %1079 = vsyncpa [#allocation7], 1
    %1080 = vsyncpa [#allocation5], 1
    %s1081 = scalar_lea.sflag [#allocation5], 1
    %1082 = vsyncpa %s1081, 1

</llo_original>
